<compile_context>
chip_gen: v7x
topology: tpu7x:2x2x1
jax: 0.10.0
libtpu: 0.0.40
codegen_flags: <defaults>
</compile_context>

<pallas_src>
import functools
import math

import jax
import jax.numpy as jnp
from jax import lax
from jax.experimental import pallas as pl
from jax.experimental.pallas import tpu as pltpu


# Below this sequence length the serial RNN recurrence is fully unrolled at
# trace time (static slices, per-timestep fused epilogue, no scratch); above
# it we fall back to a fori_loop over a time-major VMEM scratch.
_RNN_UNROLL_MAX = 64
_SQRT_HALF = 1.0 / math.sqrt(2.0)


def _gelu_exact(x):
    # PyTorch nn.GELU() default = exact (erf) GELU.
    return 0.5 * x * (1.0 + lax.erf(x * _SQRT_HALF))


def _ffn_kernel(x_ref,
                w1d_ref, b1d_ref,
                wmid_ref, bmid_ref,
                whh_ref,
                w2u_ref, b2u_ref,
                o_ref,
                *scratch,
                use_bf16):
    TB, S, D = x_ref.shape
    rank = whh_ref.shape[0]

    x = x_ref[...]                                   # (TB, S, D) f32
    xf = x.reshape(TB * S, D)                        # batch-major rows (b*S + t)

    # ---- position-wise projections (parallel over all TB*S rows) -----------
    w1d = w1d_ref[...]
    if use_bf16:
        y = jnp.dot(xf.astype(jnp.bfloat16), w1d.astype(jnp.bfloat16),
                    preferred_element_type=jnp.float32)
    else:
        y = jnp.dot(xf, w1d, preferred_element_type=jnp.float32)
    y = jnp.maximum(y + b1d_ref[...], 0.0)           # down-projection + ReLU

    # up-proj -> dropout(identity) -> down-proj -> RNN input proj, fused into
    # a single rank x rank matmul (weights fused once in the wrapper).
    pre = jnp.dot(y, wmid_ref[...], preferred_element_type=jnp.float32) + bmid_ref[...]
    pre3 = pre.reshape(TB, S, rank)

    whh = whh_ref[...]
    w2u = w2u_ref[...]
    b2u = b2u_ref[...]
    h = jnp.zeros((TB, rank), jnp.float32)

    if S <= _RNN_UNROLL_MAX:
        # Fully unrolled Elman recurrence (tanh, h0 = 0) with a per-timestep
        # fused epilogue: step t's gelu/up-projection/residual/store are
        # independent of step t+1's serial MXU->tanh chain, so the scheduler
        # can hide them under it.  No VMEM scratch in this path.
        for t in range(S):
            h = jnp.tanh(pre3[:, t, :]
                         + jnp.dot(h, whh, preferred_element_type=jnp.float32))
            g = _gelu_exact(h)                        # (TB, rank)
            if use_bf16:
                o_t = jnp.dot(g.astype(jnp.bfloat16), w2u.astype(jnp.bfloat16),
                              preferred_element_type=jnp.float32)
            else:
                o_t = jnp.dot(g, w2u, preferred_element_type=jnp.float32)
            o_t = o_t + b2u                           # (TB, D)
            o_ref[:, t:t + 1, :] = (x[:, t:t + 1, :]
                                    + o_t[:, None, :]).astype(o_ref.dtype)
    else:
        # Large S: time-major scratch so each step addresses a leading-dim row
        # block (well-supported dynamic-index pattern), then batched epilogue.
        rnn_scr, = scratch                            # (S, TB, rank)
        rnn_scr[...] = jnp.transpose(pre3, (1, 0, 2))

        def step(t, h_prev):
            h_new = jnp.tanh(rnn_scr[t]
                             + jnp.dot(h_prev, whh,
                                       preferred_element_type=jnp.float32))
            rnn_scr[t] = h_new
            return h_new

        lax.fori_loop(0, S, step, h, unroll=8)

        rnn = jnp.transpose(rnn_scr[...], (1, 0, 2))  # (TB, S, rank)
        g = _gelu_exact(rnn).reshape(TB * S, rank)
        if use_bf16:
            out = jnp.dot(g.astype(jnp.bfloat16), w2u.astype(jnp.bfloat16),
                          preferred_element_type=jnp.float32)
        else:
            out = jnp.dot(g, w2u, preferred_element_type=jnp.float32)
        out = out + b2u
        o_ref[...] = (x + out.reshape(TB, S, D)).astype(o_ref.dtype)


def fuse_params(params):
    """One-time (parameter-load-time) eval-mode weight fusion."""
    hp = lax.Precision.HIGHEST
    w_mid = jnp.dot(jnp.dot(params["w1u"], params["w2d"], precision=hp),
                    params["wih"], precision=hp)
    b_mid = (jnp.dot(jnp.dot(params["b1u"], params["w2d"], precision=hp)
                     + params["b2d"], params["wih"], precision=hp)
             + params["bih"] + params["bhh"])
    return dict(w1d=params["w1d"], b1d=params["b1d"],
                w_mid=w_mid, b_mid=b_mid,
                whh=params["whh"],
                w2u=params["w2u"], b2u=params["b2u"])


def _pick_batch_block(B, S, D, rank, budget_bytes=8 << 20):
    """Largest divisor of B whose block fits the per-block budget, preferring
    >= 2 grid programs so both v7x TensorCores get work."""
    per_row = (2 * S * D + 2 * S * rank) * 4
    cap = max(1, budget_bytes // max(per_row, 1))
    divisors = [d for d in range(1, B + 1) if B % d == 0 and d <= cap]
    if not divisors:
        return 1
    multi = [d for d in divisors if B // d >= 2]
    return max(multi) if multi else max(divisors)


def read_ffn(x, fused, *, use_bf16=False):
    B, S, D = x.shape
    rank = fused["whh"].shape[0]
    TB = _pick_batch_block(B, S, D, rank)
    grid = (B // TB,)

    weight_args = [fused["w1d"], fused["b1d"], fused["w_mid"], fused["b_mid"],
                   fused["whh"], fused["w2u"], fused["b2u"]]

    def _full_spec(a):
        nd = a.ndim
        return pl.BlockSpec(a.shape, lambda i, _nd=nd: (0,) * _nd)

    scratch_shapes = []
    if S > _RNN_UNROLL_MAX:
        scratch_shapes.append(pltpu.VMEM((S, TB, rank), jnp.float32))

    # VMEM sizing: x/o blocks are double-buffered by the pipeline; weights are
    # small.  Clamp so the limit is always safe on v7x's 64 MiB VMEM.
    blk = TB * S * D * 4
    wt = sum(int(a.size) * 4 for a in weight_args)
    scr = S * TB * rank * 4 if scratch_shapes else 0
    est = 4 * blk + 2 * wt + scr
    vmem_limit = int(min(max(2 * est + (8 << 20), 32 << 20), 48 << 20))

    kernel = functools.partial(_ffn_kernel, use_bf16=use_bf16)

    return pl.pallas_call(
        kernel,
        out_shape=jax.ShapeDtypeStruct((B, S, D), x.dtype),
        grid_spec=pltpu.PrefetchScalarGridSpec(
            num_scalar_prefetch=0,
            grid=grid,
            in_specs=[pl.BlockSpec((TB, S, D), lambda i: (i, 0, 0))]
                     + [_full_spec(a) for a in weight_args],
            out_specs=pl.BlockSpec((TB, S, D), lambda i: (i, 0, 0)),
            scratch_shapes=scratch_shapes,
        ),
        compiler_params=pltpu.CompilerParams(
            dimension_semantics=("parallel",),
            vmem_limit_bytes=vmem_limit),
    )(x, *weight_args)


def init_params(key, dims, rank, ratio):
    h_dims = int(dims * ratio)
    keys = jax.random.split(key, 12)

    def linear(kw, kb, fan_in, fan_out):
        # PyTorch nn.Linear default: U(-1/sqrt(fan_in), 1/sqrt(fan_in)).
        bound = 1.0 / math.sqrt(fan_in)
        w = jax.random.uniform(kw, (fan_in, fan_out), jnp.float32, -bound, bound)
        b = jax.random.uniform(kb, (1, fan_out), jnp.float32, -bound, bound)
        return w, b

    w1d, b1d = linear(keys[0], keys[1], dims, rank)
    w1u, b1u = linear(keys[2], keys[3], rank, h_dims)
    w2d, b2d = linear(keys[4], keys[5], h_dims, rank)
    w2u, b2u = linear(keys[6], keys[7], rank, dims)

    # RNN params ~ N(0, 0.001) exactly as in the module's __init__.
    wih = 0.001 * jax.random.normal(keys[8], (rank, rank), jnp.float32)
    whh = 0.001 * jax.random.normal(keys[9], (rank, rank), jnp.float32)
    bih = 0.001 * jax.random.normal(keys[10], (1, rank), jnp.float32)
    bhh = 0.001 * jax.random.normal(keys[11], (1, rank), jnp.float32)

    return dict(w1d=w1d, b1d=b1d, w1u=w1u, b1u=b1u,
                w2d=w2d, b2d=b2d, wih=wih, bih=bih,
                whh=whh, bhh=bhh, w2u=w2u, b2u=b2u)


def reference_ffn(x, p):
    """Pure-JAX reference mirroring the PyTorch forward (eval mode, unfused)."""
    y = jnp.maximum(x @ p["w1d"] + p["b1d"], 0.0)
    y = y @ p["w1u"] + p["b1u"]
    y = y @ p["w2d"] + p["b2d"]

    B, S, rank = y.shape
    h = jnp.zeros((B, rank), jnp.float32)
    outs = []
    for t in range(S):
        h = jnp.tanh(y[:, t, :] @ p["wih"] + p["bih"]
                     + h @ p["whh"] + p["bhh"])
        outs.append(h)
    rnn_out = jnp.stack(outs, axis=1)
    g = 0.5 * rnn_out * (1.0 + lax.erf(rnn_out / math.sqrt(2.0)))
    out = g @ p["w2u"] + p["b2u"]
    return x + out


if __name__ == "__main__":
    B, S, dims, rank, ratio = 2, 8, 32, 32, 4

    key = jax.random.PRNGKey(0)
    kx, kp = jax.random.split(key)
    x = jax.random.normal(kx, (B, S, dims), jnp.float32)
    params = init_params(kp, dims, rank, ratio)

    fused = fuse_params(params)        # one-time weight fusion (eval mode)

    out = read_ffn(x, fused)
    out = jax.block_until_ready(out)

    ref = reference_ffn(x, params)
    assert out.shape == (B, S, dims)
    assert jnp.allclose(out, ref, atol=1e-4, rtol=1e-4), "mismatch vs reference"

    print("KERNEL_OK")
</pallas_src>

<mosaic_0001>
module attributes {stable_mosaic.version = 11 : i64} {
  func.func @_ffn_kernel(%arg0: i32, %arg1: memref<1x8x32xf32, #tpu.memory_space<vmem>>, %arg2: memref<32x32xf32, #tpu.memory_space<vmem>>, %arg3: memref<1x32xf32, #tpu.memory_space<vmem>>, %arg4: memref<32x32xf32, #tpu.memory_space<vmem>>, %arg5: memref<1x32xf32, #tpu.memory_space<vmem>>, %arg6: memref<32x32xf32, #tpu.memory_space<vmem>>, %arg7: memref<32x32xf32, #tpu.memory_space<vmem>>, %arg8: memref<1x32xf32, #tpu.memory_space<vmem>>, %arg9: memref<1x8x32xf32, #tpu.memory_space<vmem>>) attributes {dimension_semantics = [#tpu.dimension_semantics<parallel>], iteration_bounds = array<i64: 2>, scalar_prefetch = 0 : i64, scratch_operands = 0 : i64, tpu.core_type = #tpu.core_type<tc>, window_params = [{transform_indices = @transform_0, window_bounds = array<i64: 1, 8, 32>}, {pipeline_mode = #tpu.pipeline_mode<synchronous>, transform_indices = @transform_1, window_bounds = array<i64: 32, 32>}, {pipeline_mode = #tpu.pipeline_mode<synchronous>, transform_indices = @transform_2, window_bounds = array<i64: 1, 32>}, {pipeline_mode = #tpu.pipeline_mode<synchronous>, transform_indices = @transform_3, window_bounds = array<i64: 32, 32>}, {pipeline_mode = #tpu.pipeline_mode<synchronous>, transform_indices = @transform_4, window_bounds = array<i64: 1, 32>}, {pipeline_mode = #tpu.pipeline_mode<synchronous>, transform_indices = @transform_5, window_bounds = array<i64: 32, 32>}, {pipeline_mode = #tpu.pipeline_mode<synchronous>, transform_indices = @transform_6, window_bounds = array<i64: 32, 32>}, {pipeline_mode = #tpu.pipeline_mode<synchronous>, transform_indices = @transform_7, window_bounds = array<i64: 1, 32>}, {transform_indices = @transform_8, window_bounds = array<i64: 1, 8, 32>}]} {
    %c0 = arith.constant 0 : index
    %c0_0 = arith.constant 0 : index
    %c0_1 = arith.constant 0 : index
    %0 = vector.load %arg1[%c0, %c0_0, %c0_1] : memref<1x8x32xf32, #tpu.memory_space<vmem>>, vector<1x8x32xf32>
    %1 = vector.shape_cast %0 : vector<1x8x32xf32> to vector<8x32xf32>
    %c0_2 = arith.constant 0 : index
    %c0_3 = arith.constant 0 : index
    %2 = vector.load %arg2[%c0_2, %c0_3] : memref<32x32xf32, #tpu.memory_space<vmem>>, vector<32x32xf32>
    %cst = arith.constant dense<0.000000e+00> : vector<8x32xf32>
    %3 = tpu.matmul %1, %2, %cst {dimension_numbers = #tpu.dot_dimension_numbers<[1], [0], [0], [1], [0, 0, 1, 1], [], []>} : vector<8x32xf32>, vector<32x32xf32>, vector<8x32xf32> -> vector<8x32xf32>
    %c0_4 = arith.constant 0 : index
    %c0_5 = arith.constant 0 : index
    %4 = vector.load %arg3[%c0_4, %c0_5] : memref<1x32xf32, #tpu.memory_space<vmem>>, vector<1x32xf32>
    %5 = vector.broadcast %4 : vector<1x32xf32> to vector<8x32xf32>
    %6 = arith.addf %3, %5 : vector<8x32xf32>
    %cst_6 = arith.constant 0.000000e+00 : f32
    %7 = vector.broadcast %cst_6 : f32 to vector<8x32xf32>
    %8 = arith.maximumf %6, %7 : vector<8x32xf32>
    %c0_7 = arith.constant 0 : index
    %c0_8 = arith.constant 0 : index
    %9 = vector.load %arg4[%c0_7, %c0_8] : memref<32x32xf32, #tpu.memory_space<vmem>>, vector<32x32xf32>
    %cst_9 = arith.constant dense<0.000000e+00> : vector<8x32xf32>
    %10 = tpu.matmul %8, %9, %cst_9 {dimension_numbers = #tpu.dot_dimension_numbers<[1], [0], [0], [1], [0, 0, 1, 1], [], []>} : vector<8x32xf32>, vector<32x32xf32>, vector<8x32xf32> -> vector<8x32xf32>
    %c0_10 = arith.constant 0 : index
    %c0_11 = arith.constant 0 : index
    %11 = vector.load %arg5[%c0_10, %c0_11] : memref<1x32xf32, #tpu.memory_space<vmem>>, vector<1x32xf32>
    %12 = vector.broadcast %11 : vector<1x32xf32> to vector<8x32xf32>
    %13 = arith.addf %10, %12 : vector<8x32xf32>
    %14 = vector.shape_cast %13 : vector<8x32xf32> to vector<1x8x32xf32>
    %c0_12 = arith.constant 0 : index
    %c0_13 = arith.constant 0 : index
    %15 = vector.load %arg6[%c0_12, %c0_13] : memref<32x32xf32, #tpu.memory_space<vmem>>, vector<32x32xf32>
    %c0_14 = arith.constant 0 : index
    %c0_15 = arith.constant 0 : index
    %16 = vector.load %arg7[%c0_14, %c0_15] : memref<32x32xf32, #tpu.memory_space<vmem>>, vector<32x32xf32>
    %c0_16 = arith.constant 0 : index
    %c0_17 = arith.constant 0 : index
    %17 = vector.load %arg8[%c0_16, %c0_17] : memref<1x32xf32, #tpu.memory_space<vmem>>, vector<1x32xf32>
    %cst_18 = arith.constant 0.000000e+00 : f32
    %18 = vector.broadcast %cst_18 : f32 to vector<1x32xf32>
    %19 = vector.extract_strided_slice %14 {offsets = [0, 0, 0], sizes = [1, 1, 32], strides = [1, 1, 1]} : vector<1x8x32xf32> to vector<1x1x32xf32>
    %20 = vector.shape_cast %19 : vector<1x1x32xf32> to vector<1x32xf32>
    %cst_19 = arith.constant dense<0.000000e+00> : vector<1x32xf32>
    %21 = tpu.matmul %18, %15, %cst_19 {dimension_numbers = #tpu.dot_dimension_numbers<[1], [0], [0], [1], [0, 0, 1, 1], [], []>} : vector<1x32xf32>, vector<32x32xf32>, vector<1x32xf32> -> vector<1x32xf32>
    %22 = arith.addf %20, %21 : vector<1x32xf32>
    %23 = math.tanh %22 : vector<1x32xf32>
    %cst_20 = arith.constant 5.000000e-01 : f32
    %24 = vector.broadcast %cst_20 : f32 to vector<1x32xf32>
    %25 = arith.mulf %24, %23 : vector<1x32xf32>
    %cst_21 = arith.constant 0.707106769 : f32
    %26 = vector.broadcast %cst_21 : f32 to vector<1x32xf32>
    %27 = arith.mulf %23, %26 : vector<1x32xf32>
    %28 = math.erf %27 : vector<1x32xf32>
    %cst_22 = arith.constant 1.000000e+00 : f32
    %29 = vector.broadcast %cst_22 : f32 to vector<1x32xf32>
    %30 = arith.addf %29, %28 : vector<1x32xf32>
    %31 = arith.mulf %25, %30 : vector<1x32xf32>
    %cst_23 = arith.constant dense<0.000000e+00> : vector<1x32xf32>
    %32 = tpu.matmul %31, %16, %cst_23 {dimension_numbers = #tpu.dot_dimension_numbers<[1], [0], [0], [1], [0, 0, 1, 1], [], []>} : vector<1x32xf32>, vector<32x32xf32>, vector<1x32xf32> -> vector<1x32xf32>
    %33 = arith.addf %32, %17 : vector<1x32xf32>
    %34 = vector.extract_strided_slice %0 {offsets = [0, 0, 0], sizes = [1, 1, 32], strides = [1, 1, 1]} : vector<1x8x32xf32> to vector<1x1x32xf32>
    %35 = vector.shape_cast %33 : vector<1x32xf32> to vector<1x1x32xf32>
    %36 = arith.addf %34, %35 : vector<1x1x32xf32>
    %c0_24 = arith.constant 0 : index
    %c0_25 = arith.constant 0 : index
    %c0_26 = arith.constant 0 : index
    %37 = vector.load %arg9[%c0_24, %c0_25, %c0_26] : memref<1x8x32xf32, #tpu.memory_space<vmem>>, vector<1x1x32xf32>
    tpu.vector_store %arg9[%c0_24, %c0_25, %c0_26], %36 {strides = array<i32>} : memref<1x8x32xf32, #tpu.memory_space<vmem>>, vector<1x1x32xf32>,
    %38 = vector.extract_strided_slice %14 {offsets = [0, 1, 0], sizes = [1, 1, 32], strides = [1, 1, 1]} : vector<1x8x32xf32> to vector<1x1x32xf32>
    %39 = vector.shape_cast %38 : vector<1x1x32xf32> to vector<1x32xf32>
    %cst_27 = arith.constant dense<0.000000e+00> : vector<1x32xf32>
    %40 = tpu.matmul %23, %15, %cst_27 {dimension_numbers = #tpu.dot_dimension_numbers<[1], [0], [0], [1], [0, 0, 1, 1], [], []>} : vector<1x32xf32>, vector<32x32xf32>, vector<1x32xf32> -> vector<1x32xf32>
    %41 = arith.addf %39, %40 : vector<1x32xf32>
    %42 = math.tanh %41 : vector<1x32xf32>
    %cst_28 = arith.constant 5.000000e-01 : f32
    %43 = vector.broadcast %cst_28 : f32 to vector<1x32xf32>
    %44 = arith.mulf %43, %42 : vector<1x32xf32>
    %cst_29 = arith.constant 0.707106769 : f32
    %45 = vector.broadcast %cst_29 : f32 to vector<1x32xf32>
    %46 = arith.mulf %42, %45 : vector<1x32xf32>
    %47 = math.erf %46 : vector<1x32xf32>
    %cst_30 = arith.constant 1.000000e+00 : f32
    %48 = vector.broadcast %cst_30 : f32 to vector<1x32xf32>
    %49 = arith.addf %48, %47 : vector<1x32xf32>
    %50 = arith.mulf %44, %49 : vector<1x32xf32>
    %cst_31 = arith.constant dense<0.000000e+00> : vector<1x32xf32>
    %51 = tpu.matmul %50, %16, %cst_31 {dimension_numbers = #tpu.dot_dimension_numbers<[1], [0], [0], [1], [0, 0, 1, 1], [], []>} : vector<1x32xf32>, vector<32x32xf32>, vector<1x32xf32> -> vector<1x32xf32>
    %52 = arith.addf %51, %17 : vector<1x32xf32>
    %53 = vector.extract_strided_slice %0 {offsets = [0, 1, 0], sizes = [1, 1, 32], strides = [1, 1, 1]} : vector<1x8x32xf32> to vector<1x1x32xf32>
    %54 = vector.shape_cast %52 : vector<1x32xf32> to vector<1x1x32xf32>
    %55 = arith.addf %53, %54 : vector<1x1x32xf32>
    %c0_32 = arith.constant 0 : index
    %c1 = arith.constant 1 : index
    %c0_33 = arith.constant 0 : index
    %56 = vector.load %arg9[%c0_32, %c1, %c0_33] : memref<1x8x32xf32, #tpu.memory_space<vmem>>, vector<1x1x32xf32>
    tpu.vector_store %arg9[%c0_32, %c1, %c0_33], %55 {strides = array<i32>} : memref<1x8x32xf32, #tpu.memory_space<vmem>>, vector<1x1x32xf32>,
    %57 = vector.extract_strided_slice %14 {offsets = [0, 2, 0], sizes = [1, 1, 32], strides = [1, 1, 1]} : vector<1x8x32xf32> to vector<1x1x32xf32>
    %58 = vector.shape_cast %57 : vector<1x1x32xf32> to vector<1x32xf32>
    %cst_34 = arith.constant dense<0.000000e+00> : vector<1x32xf32>
    %59 = tpu.matmul %42, %15, %cst_34 {dimension_numbers = #tpu.dot_dimension_numbers<[1], [0], [0], [1], [0, 0, 1, 1], [], []>} : vector<1x32xf32>, vector<32x32xf32>, vector<1x32xf32> -> vector<1x32xf32>
    %60 = arith.addf %58, %59 : vector<1x32xf32>
    %61 = math.tanh %60 : vector<1x32xf32>
    %cst_35 = arith.constant 5.000000e-01 : f32
    %62 = vector.broadcast %cst_35 : f32 to vector<1x32xf32>
    %63 = arith.mulf %62, %61 : vector<1x32xf32>
    %cst_36 = arith.constant 0.707106769 : f32
    %64 = vector.broadcast %cst_36 : f32 to vector<1x32xf32>
    %65 = arith.mulf %61, %64 : vector<1x32xf32>
    %66 = math.erf %65 : vector<1x32xf32>
    %cst_37 = arith.constant 1.000000e+00 : f32
    %67 = vector.broadcast %cst_37 : f32 to vector<1x32xf32>
    %68 = arith.addf %67, %66 : vector<1x32xf32>
    %69 = arith.mulf %63, %68 : vector<1x32xf32>
    %cst_38 = arith.constant dense<0.000000e+00> : vector<1x32xf32>
    %70 = tpu.matmul %69, %16, %cst_38 {dimension_numbers = #tpu.dot_dimension_numbers<[1], [0], [0], [1], [0, 0, 1, 1], [], []>} : vector<1x32xf32>, vector<32x32xf32>, vector<1x32xf32> -> vector<1x32xf32>
    %71 = arith.addf %70, %17 : vector<1x32xf32>
    %72 = vector.extract_strided_slice %0 {offsets = [0, 2, 0], sizes = [1, 1, 32], strides = [1, 1, 1]} : vector<1x8x32xf32> to vector<1x1x32xf32>
    %73 = vector.shape_cast %71 : vector<1x32xf32> to vector<1x1x32xf32>
    %74 = arith.addf %72, %73 : vector<1x1x32xf32>
    %c0_39 = arith.constant 0 : index
    %c2 = arith.constant 2 : index
    %c0_40 = arith.constant 0 : index
    %75 = vector.load %arg9[%c0_39, %c2, %c0_40] : memref<1x8x32xf32, #tpu.memory_space<vmem>>, vector<1x1x32xf32>
    tpu.vector_store %arg9[%c0_39, %c2, %c0_40], %74 {strides = array<i32>} : memref<1x8x32xf32, #tpu.memory_space<vmem>>, vector<1x1x32xf32>,
    %76 = vector.extract_strided_slice %14 {offsets = [0, 3, 0], sizes = [1, 1, 32], strides = [1, 1, 1]} : vector<1x8x32xf32> to vector<1x1x32xf32>
    %77 = vector.shape_cast %76 : vector<1x1x32xf32> to vector<1x32xf32>
    %cst_41 = arith.constant dense<0.000000e+00> : vector<1x32xf32>
    %78 = tpu.matmul %61, %15, %cst_41 {dimension_numbers = #tpu.dot_dimension_numbers<[1], [0], [0], [1], [0, 0, 1, 1], [], []>} : vector<1x32xf32>, vector<32x32xf32>, vector<1x32xf32> -> vector<1x32xf32>
    %79 = arith.addf %77, %78 : vector<1x32xf32>
    %80 = math.tanh %79 : vector<1x32xf32>
    %cst_42 = arith.constant 5.000000e-01 : f32
    %81 = vector.broadcast %cst_42 : f32 to vector<1x32xf32>
    %82 = arith.mulf %81, %80 : vector<1x32xf32>
    %cst_43 = arith.constant 0.707106769 : f32
    %83 = vector.broadcast %cst_43 : f32 to vector<1x32xf32>
    %84 = arith.mulf %80, %83 : vector<1x32xf32>
    %85 = math.erf %84 : vector<1x32xf32>
    %cst_44 = arith.constant 1.000000e+00 : f32
    %86 = vector.broadcast %cst_44 : f32 to vector<1x32xf32>
    %87 = arith.addf %86, %85 : vector<1x32xf32>
    %88 = arith.mulf %82, %87 : vector<1x32xf32>
    %cst_45 = arith.constant dense<0.000000e+00> : vector<1x32xf32>
    %89 = tpu.matmul %88, %16, %cst_45 {dimension_numbers = #tpu.dot_dimension_numbers<[1], [0], [0], [1], [0, 0, 1, 1], [], []>} : vector<1x32xf32>, vector<32x32xf32>, vector<1x32xf32> -> vector<1x32xf32>
    %90 = arith.addf %89, %17 : vector<1x32xf32>
    %91 = vector.extract_strided_slice %0 {offsets = [0, 3, 0], sizes = [1, 1, 32], strides = [1, 1, 1]} : vector<1x8x32xf32> to vector<1x1x32xf32>
    %92 = vector.shape_cast %90 : vector<1x32xf32> to vector<1x1x32xf32>
    %93 = arith.addf %91, %92 : vector<1x1x32xf32>
    %c0_46 = arith.constant 0 : index
    %c3 = arith.constant 3 : index
    %c0_47 = arith.constant 0 : index
    %94 = vector.load %arg9[%c0_46, %c3, %c0_47] : memref<1x8x32xf32, #tpu.memory_space<vmem>>, vector<1x1x32xf32>
    tpu.vector_store %arg9[%c0_46, %c3, %c0_47], %93 {strides = array<i32>} : memref<1x8x32xf32, #tpu.memory_space<vmem>>, vector<1x1x32xf32>,
    %95 = vector.extract_strided_slice %14 {offsets = [0, 4, 0], sizes = [1, 1, 32], strides = [1, 1, 1]} : vector<1x8x32xf32> to vector<1x1x32xf32>
    %96 = vector.shape_cast %95 : vector<1x1x32xf32> to vector<1x32xf32>
    %cst_48 = arith.constant dense<0.000000e+00> : vector<1x32xf32>
    %97 = tpu.matmul %80, %15, %cst_48 {dimension_numbers = #tpu.dot_dimension_numbers<[1], [0], [0], [1], [0, 0, 1, 1], [], []>} : vector<1x32xf32>, vector<32x32xf32>, vector<1x32xf32> -> vector<1x32xf32>
    %98 = arith.addf %96, %97 : vector<1x32xf32>
    %99 = math.tanh %98 : vector<1x32xf32>
    %cst_49 = arith.constant 5.000000e-01 : f32
    %100 = vector.broadcast %cst_49 : f32 to vector<1x32xf32>
    %101 = arith.mulf %100, %99 : vector<1x32xf32>
    %cst_50 = arith.constant 0.707106769 : f32
    %102 = vector.broadcast %cst_50 : f32 to vector<1x32xf32>
    %103 = arith.mulf %99, %102 : vector<1x32xf32>
    %104 = math.erf %103 : vector<1x32xf32>
    %cst_51 = arith.constant 1.000000e+00 : f32
    %105 = vector.broadcast %cst_51 : f32 to vector<1x32xf32>
    %106 = arith.addf %105, %104 : vector<1x32xf32>
    %107 = arith.mulf %101, %106 : vector<1x32xf32>
    %cst_52 = arith.constant dense<0.000000e+00> : vector<1x32xf32>
    %108 = tpu.matmul %107, %16, %cst_52 {dimension_numbers = #tpu.dot_dimension_numbers<[1], [0], [0], [1], [0, 0, 1, 1], [], []>} : vector<1x32xf32>, vector<32x32xf32>, vector<1x32xf32> -> vector<1x32xf32>
    %109 = arith.addf %108, %17 : vector<1x32xf32>
    %110 = vector.extract_strided_slice %0 {offsets = [0, 4, 0], sizes = [1, 1, 32], strides = [1, 1, 1]} : vector<1x8x32xf32> to vector<1x1x32xf32>
    %111 = vector.shape_cast %109 : vector<1x32xf32> to vector<1x1x32xf32>
    %112 = arith.addf %110, %111 : vector<1x1x32xf32>
    %c0_53 = arith.constant 0 : index
    %c4 = arith.constant 4 : index
    %c0_54 = arith.constant 0 : index
    %113 = vector.load %arg9[%c0_53, %c4, %c0_54] : memref<1x8x32xf32, #tpu.memory_space<vmem>>, vector<1x1x32xf32>
    tpu.vector_store %arg9[%c0_53, %c4, %c0_54], %112 {strides = array<i32>} : memref<1x8x32xf32, #tpu.memory_space<vmem>>, vector<1x1x32xf32>,
    %114 = vector.extract_strided_slice %14 {offsets = [0, 5, 0], sizes = [1, 1, 32], strides = [1, 1, 1]} : vector<1x8x32xf32> to vector<1x1x32xf32>
    %115 = vector.shape_cast %114 : vector<1x1x32xf32> to vector<1x32xf32>
    %cst_55 = arith.constant dense<0.000000e+00> : vector<1x32xf32>
    %116 = tpu.matmul %99, %15, %cst_55 {dimension_numbers = #tpu.dot_dimension_numbers<[1], [0], [0], [1], [0, 0, 1, 1], [], []>} : vector<1x32xf32>, vector<32x32xf32>, vector<1x32xf32> -> vector<1x32xf32>
    %117 = arith.addf %115, %116 : vector<1x32xf32>
    %118 = math.tanh %117 : vector<1x32xf32>
    %cst_56 = arith.constant 5.000000e-01 : f32
    %119 = vector.broadcast %cst_56 : f32 to vector<1x32xf32>
    %120 = arith.mulf %119, %118 : vector<1x32xf32>
    %cst_57 = arith.constant 0.707106769 : f32
    %121 = vector.broadcast %cst_57 : f32 to vector<1x32xf32>
    %122 = arith.mulf %118, %121 : vector<1x32xf32>
    %123 = math.erf %122 : vector<1x32xf32>
    %cst_58 = arith.constant 1.000000e+00 : f32
    %124 = vector.broadcast %cst_58 : f32 to vector<1x32xf32>
    %125 = arith.addf %124, %123 : vector<1x32xf32>
    %126 = arith.mulf %120, %125 : vector<1x32xf32>
    %cst_59 = arith.constant dense<0.000000e+00> : vector<1x32xf32>
    %127 = tpu.matmul %126, %16, %cst_59 {dimension_numbers = #tpu.dot_dimension_numbers<[1], [0], [0], [1], [0, 0, 1, 1], [], []>} : vector<1x32xf32>, vector<32x32xf32>, vector<1x32xf32> -> vector<1x32xf32>
    %128 = arith.addf %127, %17 : vector<1x32xf32>
    %129 = vector.extract_strided_slice %0 {offsets = [0, 5, 0], sizes = [1, 1, 32], strides = [1, 1, 1]} : vector<1x8x32xf32> to vector<1x1x32xf32>
    %130 = vector.shape_cast %128 : vector<1x32xf32> to vector<1x1x32xf32>
    %131 = arith.addf %129, %130 : vector<1x1x32xf32>
    %c0_60 = arith.constant 0 : index
    %c5 = arith.constant 5 : index
    %c0_61 = arith.constant 0 : index
    %132 = vector.load %arg9[%c0_60, %c5, %c0_61] : memref<1x8x32xf32, #tpu.memory_space<vmem>>, vector<1x1x32xf32>
    tpu.vector_store %arg9[%c0_60, %c5, %c0_61], %131 {strides = array<i32>} : memref<1x8x32xf32, #tpu.memory_space<vmem>>, vector<1x1x32xf32>,
    %133 = vector.extract_strided_slice %14 {offsets = [0, 6, 0], sizes = [1, 1, 32], strides = [1, 1, 1]} : vector<1x8x32xf32> to vector<1x1x32xf32>
    %134 = vector.shape_cast %133 : vector<1x1x32xf32> to vector<1x32xf32>
    %cst_62 = arith.constant dense<0.000000e+00> : vector<1x32xf32>
    %135 = tpu.matmul %118, %15, %cst_62 {dimension_numbers = #tpu.dot_dimension_numbers<[1], [0], [0], [1], [0, 0, 1, 1], [], []>} : vector<1x32xf32>, vector<32x32xf32>, vector<1x32xf32> -> vector<1x32xf32>
    %136 = arith.addf %134, %135 : vector<1x32xf32>
    %137 = math.tanh %136 : vector<1x32xf32>
    %cst_63 = arith.constant 5.000000e-01 : f32
    %138 = vector.broadcast %cst_63 : f32 to vector<1x32xf32>
    %139 = arith.mulf %138, %137 : vector<1x32xf32>
    %cst_64 = arith.constant 0.707106769 : f32
    %140 = vector.broadcast %cst_64 : f32 to vector<1x32xf32>
    %141 = arith.mulf %137, %140 : vector<1x32xf32>
    %142 = math.erf %141 : vector<1x32xf32>
    %cst_65 = arith.constant 1.000000e+00 : f32
    %143 = vector.broadcast %cst_65 : f32 to vector<1x32xf32>
    %144 = arith.addf %143, %142 : vector<1x32xf32>
    %145 = arith.mulf %139, %144 : vector<1x32xf32>
    %cst_66 = arith.constant dense<0.000000e+00> : vector<1x32xf32>
    %146 = tpu.matmul %145, %16, %cst_66 {dimension_numbers = #tpu.dot_dimension_numbers<[1], [0], [0], [1], [0, 0, 1, 1], [], []>} : vector<1x32xf32>, vector<32x32xf32>, vector<1x32xf32> -> vector<1x32xf32>
    %147 = arith.addf %146, %17 : vector<1x32xf32>
    %148 = vector.extract_strided_slice %0 {offsets = [0, 6, 0], sizes = [1, 1, 32], strides = [1, 1, 1]} : vector<1x8x32xf32> to vector<1x1x32xf32>
    %149 = vector.shape_cast %147 : vector<1x32xf32> to vector<1x1x32xf32>
    %150 = arith.addf %148, %149 : vector<1x1x32xf32>
    %c0_67 = arith.constant 0 : index
    %c6 = arith.constant 6 : index
    %c0_68 = arith.constant 0 : index
    %151 = vector.load %arg9[%c0_67, %c6, %c0_68] : memref<1x8x32xf32, #tpu.memory_space<vmem>>, vector<1x1x32xf32>
    tpu.vector_store %arg9[%c0_67, %c6, %c0_68], %150 {strides = array<i32>} : memref<1x8x32xf32, #tpu.memory_space<vmem>>, vector<1x1x32xf32>,
    %152 = vector.extract_strided_slice %14 {offsets = [0, 7, 0], sizes = [1, 1, 32], strides = [1, 1, 1]} : vector<1x8x32xf32> to vector<1x1x32xf32>
    %153 = vector.shape_cast %152 : vector<1x1x32xf32> to vector<1x32xf32>
    %cst_69 = arith.constant dense<0.000000e+00> : vector<1x32xf32>
    %154 = tpu.matmul %137, %15, %cst_69 {dimension_numbers = #tpu.dot_dimension_numbers<[1], [0], [0], [1], [0, 0, 1, 1], [], []>} : vector<1x32xf32>, vector<32x32xf32>, vector<1x32xf32> -> vector<1x32xf32>
    %155 = arith.addf %153, %154 : vector<1x32xf32>
    %156 = math.tanh %155 : vector<1x32xf32>
    %cst_70 = arith.constant 5.000000e-01 : f32
    %157 = vector.broadcast %cst_70 : f32 to vector<1x32xf32>
    %158 = arith.mulf %157, %156 : vector<1x32xf32>
    %cst_71 = arith.constant 0.707106769 : f32
    %159 = vector.broadcast %cst_71 : f32 to vector<1x32xf32>
    %160 = arith.mulf %156, %159 : vector<1x32xf32>
    %161 = math.erf %160 : vector<1x32xf32>
    %cst_72 = arith.constant 1.000000e+00 : f32
    %162 = vector.broadcast %cst_72 : f32 to vector<1x32xf32>
    %163 = arith.addf %162, %161 : vector<1x32xf32>
    %164 = arith.mulf %158, %163 : vector<1x32xf32>
    %cst_73 = arith.constant dense<0.000000e+00> : vector<1x32xf32>
    %165 = tpu.matmul %164, %16, %cst_73 {dimension_numbers = #tpu.dot_dimension_numbers<[1], [0], [0], [1], [0, 0, 1, 1], [], []>} : vector<1x32xf32>, vector<32x32xf32>, vector<1x32xf32> -> vector<1x32xf32>
    %166 = arith.addf %165, %17 : vector<1x32xf32>
    %167 = vector.extract_strided_slice %0 {offsets = [0, 7, 0], sizes = [1, 1, 32], strides = [1, 1, 1]} : vector<1x8x32xf32> to vector<1x1x32xf32>
    %168 = vector.shape_cast %166 : vector<1x32xf32> to vector<1x1x32xf32>
    %169 = arith.addf %167, %168 : vector<1x1x32xf32>
    %c0_74 = arith.constant 0 : index
    %c7 = arith.constant 7 : index
    %c0_75 = arith.constant 0 : index
    %170 = vector.load %arg9[%c0_74, %c7, %c0_75] : memref<1x8x32xf32, #tpu.memory_space<vmem>>, vector<1x1x32xf32>
    tpu.vector_store %arg9[%c0_74, %c7, %c0_75], %169 {strides = array<i32>} : memref<1x8x32xf32, #tpu.memory_space<vmem>>, vector<1x1x32xf32>,
    return
  }
  func.func @transform_0(%arg0: i32) -> (i32, i32, i32) {
    %c0_i32 = arith.constant 0 : i32
    %c0_i32_0 = arith.constant 0 : i32
    %c0_i32_1 = arith.constant 0 : i32
    return %arg0, %c0_i32, %c0_i32_0 : i32, i32, i32
  }
  func.func @transform_1(%arg0: i32) -> (i32, i32) {
    %c0_i32 = arith.constant 0 : i32
    %c0_i32_0 = arith.constant 0 : i32
    %c0_i32_1 = arith.constant 0 : i32
    return %c0_i32, %c0_i32_0 : i32, i32
  }
  func.func @transform_2(%arg0: i32) -> (i32, i32) {
    %c0_i32 = arith.constant 0 : i32
    %c0_i32_0 = arith.constant 0 : i32
    %c0_i32_1 = arith.constant 0 : i32
    return %c0_i32, %c0_i32_0 : i32, i32
  }
  func.func @transform_3(%arg0: i32) -> (i32, i32) {
    %c0_i32 = arith.constant 0 : i32
    %c0_i32_0 = arith.constant 0 : i32
    %c0_i32_1 = arith.constant 0 : i32
    return %c0_i32, %c0_i32_0 : i32, i32
  }
  func.func @transform_4(%arg0: i32) -> (i32, i32) {
    %c0_i32 = arith.constant 0 : i32
    %c0_i32_0 = arith.constant 0 : i32
    %c0_i32_1 = arith.constant 0 : i32
    return %c0_i32, %c0_i32_0 : i32, i32
  }
  func.func @transform_5(%arg0: i32) -> (i32, i32) {
    %c0_i32 = arith.constant 0 : i32
    %c0_i32_0 = arith.constant 0 : i32
    %c0_i32_1 = arith.constant 0 : i32
    return %c0_i32, %c0_i32_0 : i32, i32
  }
  func.func @transform_6(%arg0: i32) -> (i32, i32) {
    %c0_i32 = arith.constant 0 : i32
    %c0_i32_0 = arith.constant 0 : i32
    %c0_i32_1 = arith.constant 0 : i32
    return %c0_i32, %c0_i32_0 : i32, i32
  }
  func.func @transform_7(%arg0: i32) -> (i32, i32) {
    %c0_i32 = arith.constant 0 : i32
    %c0_i32_0 = arith.constant 0 : i32
    %c0_i32_1 = arith.constant 0 : i32
    return %c0_i32, %c0_i32_0 : i32, i32
  }
  func.func @transform_8(%arg0: i32) -> (i32, i32, i32) {
    %c0_i32 = arith.constant 0 : i32
    %c0_i32_0 = arith.constant 0 : i32
    %c0_i32_1 = arith.constant 0 : i32
    return %arg0, %c0_i32, %c0_i32_0 : i32, i32, i32
  }
}

</mosaic_0001>

<llo_original>
// kernel: tpu_custom_call.1
$region0: #{tpu_custom_call.1}
  #allocation0 [shape = 'u32[]', space=smem, size = 0x4, offset = 0x4, fixed_abs, tag = 'smem constant byte address 0x4 - core index']
  #allocation1 [shape = 'u32[144,128]{1,0:T(1,128)}', space=vmem, size = 0x12000, scoped, tag = 'internal scratch']
  %s0 = inlined_call_operand.hbm [shape: f32[2,8,32], index: 0, kind: input, shape index: {}]
  %s1 = inlined_call_operand.hbm [shape: f32[32,32], index: 1, kind: input, shape index: {}]
  %s2 = inlined_call_operand.vmem [shape: f32[1,32], index: 2, kind: input, shape index: {}]
  %s3 = inlined_call_operand.hbm [shape: f32[32,32], index: 3, kind: input, shape index: {}]
  %s4 = inlined_call_operand.vmem [shape: f32[1,32], index: 4, kind: input, shape index: {}]
  %s5 = inlined_call_operand.hbm [shape: f32[32,32], index: 5, kind: input, shape index: {}]
  %s6 = inlined_call_operand.hbm [shape: f32[32,32], index: 6, kind: input, shape index: {}]
  %s7 = inlined_call_operand.vmem [shape: f32[1,32], index: 7, kind: input, shape index: {}]
  %s8 = inlined_call_operand.hbm [shape: f32[2,8,32], index: 8, kind: output, shape index: {}]
  %s9 = sld [smem:[#allocation0]]
  $region85: #{tpu_custom_call.1} parent=0
    _
  %s11 = ssub.s32 1, %s9
  %s12 = scalar_select 0, %s11, %s9
  $region1: #{tpu_custom_call.1} parent=0
    #allocation2 [shape = 'u8[8192]{0}', space=vmem, size = 0x2000, scoped, tag = 'input window, operand 0']
    #allocation3 [shape = 's32[2]{0}', space=sflag, size = 0x8, scoped, tag = 'scoped memory for tpu_custom_call.1']
    #allocation4 [shape = 's32[2]{0}', space=sflag, size = 0x8, scoped, tag = 'scoped memory for tpu_custom_call.1']
    #allocation5 [shape = 'u8[16384]{0}', space=vmem, size = 0x4000, scoped, tag = 'input window, operand 1, single buffered']
    #allocation6 [shape = 's32[1]{0}', space=sflag, size = 0x4, scoped, tag = 'scoped memory for tpu_custom_call.1']
    #allocation7 [shape = 'u8[16384]{0}', space=vmem, size = 0x4000, scoped, tag = 'input window, operand 3, single buffered']
    #allocation8 [shape = 'u8[16384]{0}', space=vmem, size = 0x4000, scoped, tag = 'input window, operand 5, single buffered']
    #allocation9 [shape = 's32[1]{0}', space=sflag, size = 0x4, scoped, tag = 'scoped memory for tpu_custom_call.1']
    #allocation10 [shape = 'u8[16384]{0}', space=vmem, size = 0x4000, scoped, tag = 'input window, operand 6, single buffered']
    #allocation11 [shape = 'u8[8192]{0}', space=vmem, size = 0x2000, scoped, tag = 'output window, operand 0']
    %13 = vsyncpa [#allocation3], 0
    %s14 = scalar_lea.sflag [#allocation3], 1
    %15 = vsyncpa %s14, 0
    %16 = vsyncpa [#allocation6], 0
    %17 = vsyncpa [#allocation9], 0
    %18 = vsyncpa [#allocation4], 0
    %s19 = scalar_lea.sflag [#allocation4], 1
    %20 = vsyncpa %s19, 0
    loop: start=0, step=1, limit=4
    $region2: #{tpu_custom_call.1} parent=1 // loop_pre_header
      _
    $region3: #{tpu_custom_call.1} parent=1 // loop_header
      %s22 = sphi 0, %s26
      %p23 = scmp.ge.s32.totalorder %s22, 4
      %s32 = sphi 0, %s34
      %s35 = sphi 0, %s32
      %s36 = sphi 0, %s35
      %s52 = sphi 0, %s36
      %s56 = sphi 0, %s56
      %s58 = sphi 0, %s56
      %s59 = sphi 0, %s58
      %s73 = sphi 0, %s59
      %s77 = sphi 0, %s77
      %s79 = sphi 0, %s77
      %s80 = sphi 0, %s79
      %s94 = sphi 0, %s80
      %s98 = sphi 0, %s98
      %s100 = sphi 0, %s98
      %s101 = sphi 0, %s100
      %s115 = sphi 0, %s101
      %s119 = sphi 0, %s119
      %s121 = sphi 0, %s119
      %s122 = sphi 0, %s121
      %s136 = sphi 0, %s122
      %s140 = sphi 0, %s140
      %s142 = sphi 0, %s140
      %s143 = sphi 0, %s142
      %s157 = sphi 0, %s143
      %s161 = sphi 0, %s161
      %s163 = sphi 0, %s161
      %s164 = sphi 0, %s163
      %s178 = sphi 0, %s164
      %s182 = sphi 0, %s182
      %s184 = sphi 0, %s182
      %s185 = sphi 0, %s184
      %s199 = sphi 0, %s185
      %s205 = sphi 0, %s207
      %s208 = sphi 0, %s205
      %s209 = sphi 0, %s208
      %s225 = sphi 0, %s209
    $region4: #{tpu_custom_call.1} parent=1 // loop_header_branch
      %25 = sbr.rel (%p23) target = $region8
    $region5: #{tpu_custom_call.1} parent=1 // loop_body
      %s27 = ssub.s32 %s22, 1
      %s28 = ssub.s32 %s22, 2
      %s29 = sadd.s32 %s22, 1
      %s30 = ssub.s32 %s22, %s29
      %p31 = scmp.eq.s32.totalorder %s30, 0
      %s33 = sadd.s32 %s32, 1
      %s34 = scalar_select %p31, %s32, %s33
      %p37 = pneg %p31
      %p38 = scmp.eq.s32.totalorder %s22, 1
      %p39 = por %p37, %p38
      %p40 = scmp.ne.s32.totalorder %s32, %s35
      %p41 = scmp.eq.s32.totalorder %s22, 0
      %p42 = por %p40, %p41
      %p43 = scmp.ne.s32.totalorder %s32, %s35
      %p44 = scmp.eq.s32.totalorder %s27, 1
      %p45 = por %p43, %p44
      %p46 = scmp.ne.s32.totalorder %s35, %s36
      %p47 = scmp.eq.s32.totalorder %s27, 0
      %p48 = por %p46, %p47
      %p49 = scmp.ne.s32.totalorder %s35, %s36
      %p50 = scmp.eq.s32.totalorder %s28, 1
      %p51 = por %p49, %p50
      %p53 = scmp.ne.s32.totalorder %s36, %s52
      %p54 = scmp.eq.s32.totalorder %s28, 0
      %p55 = por %p53, %p54
      %s57 = sadd.s32 %s56, 1
      %p60 = scmp.eq.s32.totalorder %s22, 1
      %p61 = scmp.ne.s32.totalorder %s56, %s58
      %p62 = scmp.eq.s32.totalorder %s22, 0
      %p63 = por %p61, %p62
      %p64 = scmp.ne.s32.totalorder %s56, %s58
      %p65 = scmp.eq.s32.totalorder %s27, 1
      %p66 = por %p64, %p65
      %p67 = scmp.ne.s32.totalorder %s58, %s59
      %p68 = scmp.eq.s32.totalorder %s27, 0
      %p69 = por %p67, %p68
      %p70 = scmp.ne.s32.totalorder %s58, %s59
      %p71 = scmp.eq.s32.totalorder %s28, 1
      %p72 = por %p70, %p71
      %p74 = scmp.ne.s32.totalorder %s59, %s73
      %p75 = scmp.eq.s32.totalorder %s28, 0
      %p76 = por %p74, %p75
      %s78 = sadd.s32 %s77, 1
      %p81 = scmp.eq.s32.totalorder %s22, 1
      %p82 = scmp.ne.s32.totalorder %s77, %s79
      %p83 = scmp.eq.s32.totalorder %s22, 0
      %p84 = por %p82, %p83
      %p85 = scmp.ne.s32.totalorder %s77, %s79
      %p86 = scmp.eq.s32.totalorder %s27, 1
      %p87 = por %p85, %p86
      %p88 = scmp.ne.s32.totalorder %s79, %s80
      %p89 = scmp.eq.s32.totalorder %s27, 0
      %p90 = por %p88, %p89
      %p91 = scmp.ne.s32.totalorder %s79, %s80
      %p92 = scmp.eq.s32.totalorder %s28, 1
      %p93 = por %p91, %p92
      %p95 = scmp.ne.s32.totalorder %s80, %s94
      %p96 = scmp.eq.s32.totalorder %s28, 0
      %p97 = por %p95, %p96
      %s99 = sadd.s32 %s98, 1
      %p102 = scmp.eq.s32.totalorder %s22, 1
      %p103 = scmp.ne.s32.totalorder %s98, %s100
      %p104 = scmp.eq.s32.totalorder %s22, 0
      %p105 = por %p103, %p104
      %p106 = scmp.ne.s32.totalorder %s98, %s100
      %p107 = scmp.eq.s32.totalorder %s27, 1
      %p108 = por %p106, %p107
      %p109 = scmp.ne.s32.totalorder %s100, %s101
      %p110 = scmp.eq.s32.totalorder %s27, 0
      %p111 = por %p109, %p110
      %p112 = scmp.ne.s32.totalorder %s100, %s101
      %p113 = scmp.eq.s32.totalorder %s28, 1
      %p114 = por %p112, %p113
      %p116 = scmp.ne.s32.totalorder %s101, %s115
      %p117 = scmp.eq.s32.totalorder %s28, 0
      %p118 = por %p116, %p117
      %s120 = sadd.s32 %s119, 1
      %p123 = scmp.eq.s32.totalorder %s22, 1
      %p124 = scmp.ne.s32.totalorder %s119, %s121
      %p125 = scmp.eq.s32.totalorder %s22, 0
      %p126 = por %p124, %p125
      %p127 = scmp.ne.s32.totalorder %s119, %s121
      %p128 = scmp.eq.s32.totalorder %s27, 1
      %p129 = por %p127, %p128
      %p130 = scmp.ne.s32.totalorder %s121, %s122
      %p131 = scmp.eq.s32.totalorder %s27, 0
      %p132 = por %p130, %p131
      %p133 = scmp.ne.s32.totalorder %s121, %s122
      %p134 = scmp.eq.s32.totalorder %s28, 1
      %p135 = por %p133, %p134
      %p137 = scmp.ne.s32.totalorder %s122, %s136
      %p138 = scmp.eq.s32.totalorder %s28, 0
      %p139 = por %p137, %p138
      %s141 = sadd.s32 %s140, 1
      %p144 = scmp.eq.s32.totalorder %s22, 1
      %p145 = scmp.ne.s32.totalorder %s140, %s142
      %p146 = scmp.eq.s32.totalorder %s22, 0
      %p147 = por %p145, %p146
      %p148 = scmp.ne.s32.totalorder %s140, %s142
      %p149 = scmp.eq.s32.totalorder %s27, 1
      %p150 = por %p148, %p149
      %p151 = scmp.ne.s32.totalorder %s142, %s143
      %p152 = scmp.eq.s32.totalorder %s27, 0
      %p153 = por %p151, %p152
      %p154 = scmp.ne.s32.totalorder %s142, %s143
      %p155 = scmp.eq.s32.totalorder %s28, 1
      %p156 = por %p154, %p155
      %p158 = scmp.ne.s32.totalorder %s143, %s157
      %p159 = scmp.eq.s32.totalorder %s28, 0
      %p160 = por %p158, %p159
      %s162 = sadd.s32 %s161, 1
      %p165 = scmp.eq.s32.totalorder %s22, 1
      %p166 = scmp.ne.s32.totalorder %s161, %s163
      %p167 = scmp.eq.s32.totalorder %s22, 0
      %p168 = por %p166, %p167
      %p169 = scmp.ne.s32.totalorder %s161, %s163
      %p170 = scmp.eq.s32.totalorder %s27, 1
      %p171 = por %p169, %p170
      %p172 = scmp.ne.s32.totalorder %s163, %s164
      %p173 = scmp.eq.s32.totalorder %s27, 0
      %p174 = por %p172, %p173
      %p175 = scmp.ne.s32.totalorder %s163, %s164
      %p176 = scmp.eq.s32.totalorder %s28, 1
      %p177 = por %p175, %p176
      %p179 = scmp.ne.s32.totalorder %s164, %s178
      %p180 = scmp.eq.s32.totalorder %s28, 0
      %p181 = por %p179, %p180
      %s183 = sadd.s32 %s182, 1
      %p186 = scmp.eq.s32.totalorder %s22, 1
      %p187 = scmp.ne.s32.totalorder %s182, %s184
      %p188 = scmp.eq.s32.totalorder %s22, 0
      %p189 = por %p187, %p188
      %p190 = scmp.ne.s32.totalorder %s182, %s184
      %p191 = scmp.eq.s32.totalorder %s27, 1
      %p192 = por %p190, %p191
      %p193 = scmp.ne.s32.totalorder %s184, %s185
      %p194 = scmp.eq.s32.totalorder %s27, 0
      %p195 = por %p193, %p194
      %p196 = scmp.ne.s32.totalorder %s184, %s185
      %p197 = scmp.eq.s32.totalorder %s28, 1
      %p198 = por %p196, %p197
      %p200 = scmp.ne.s32.totalorder %s185, %s199
      %p201 = scmp.eq.s32.totalorder %s28, 0
      %p202 = por %p200, %p201
      %s203 = ssub.s32 %s22, %s29
      %p204 = scmp.eq.s32.totalorder %s203, 0
      %s206 = sadd.s32 %s205, 1
      %s207 = scalar_select %p204, %s205, %s206
      %p210 = pneg %p204
      %p211 = scmp.eq.s32.totalorder %s22, 1
      %p212 = por %p210, %p211
      %p213 = scmp.ne.s32.totalorder %s205, %s208
      %p214 = scmp.eq.s32.totalorder %s22, 0
      %p215 = por %p213, %p214
      %p216 = scmp.ne.s32.totalorder %s205, %s208
      %p217 = scmp.eq.s32.totalorder %s27, 1
      %p218 = por %p216, %p217
      %p219 = scmp.ne.s32.totalorder %s208, %s209
      %p220 = scmp.eq.s32.totalorder %s27, 0
      %p221 = por %p219, %p220
      %p222 = scmp.ne.s32.totalorder %s208, %s209
      %p223 = scmp.eq.s32.totalorder %s28, 1
      %p224 = por %p222, %p223
      %p226 = scmp.ne.s32.totalorder %s209, %s225
      %p227 = scmp.eq.s32.totalorder %s28, 0
      %p228 = por %p226, %p227
      %p229 = scmp.le.s32.totalorder 1, %s22
      %p230 = scmp.lt.s32.totalorder %s22, 3
      %p231 = pnand %p229, %p230
      %p232 = pneg %p231
      // Predicated region
      $region9: #{tpu_custom_call.1} parent=5 // pred_check
        _
      $region10: #{tpu_custom_call.1} parent=5 // pred_check_branch
        %234 = sbr.rel (%p231) target = $region12
      $region11: #{tpu_custom_call.1} parent=5 // pred_region
        %s235 = ssub.s32 %s22, 1
        // Predicated region
        $region13: #{tpu_custom_call.1} parent=11 // pred_check
          %p236 = pneg %p69
        $region14: #{tpu_custom_call.1} parent=11 // pred_check_branch
          %238 = sbr.rel (%p236) target = $region16
        $region15: #{tpu_custom_call.1} parent=11 // pred_region
          %s240 = ssub.s32 512, 512
          %241 = vsyncadd [#allocation6], %s240
          %s242 = sshll.u32 [#allocation5], 4
          %s243 = int_to_ptr.vmem [resolvable:$true] %s242
          %248 = dma.hbm_to_vmem [thread:$0]  %s1, 512, %s243, [#allocation6], 128, 128, 8
        $region16: #{tpu_custom_call.1} parent=11 // pred_fallthru
          _
        // Predicated region
        $region17: #{tpu_custom_call.1} parent=11 // pred_check
          %p249 = pneg %p90
        $region18: #{tpu_custom_call.1} parent=11 // pred_check_branch
          %251 = sbr.rel (%p249) target = $region20
        $region19: #{tpu_custom_call.1} parent=11 // pred_region
          _
        $region20: #{tpu_custom_call.1} parent=11 // pred_fallthru
          _
        // Predicated region
        $region21: #{tpu_custom_call.1} parent=11 // pred_check
          %p252 = pneg %p111
        $region22: #{tpu_custom_call.1} parent=11 // pred_check_branch
          %254 = sbr.rel (%p252) target = $region24
        $region23: #{tpu_custom_call.1} parent=11 // pred_region
          %s256 = ssub.s32 512, 512
          %257 = vsyncadd [#allocation6], %s256
          %s258 = sshll.u32 [#allocation7], 4
          %s259 = int_to_ptr.vmem [resolvable:$true] %s258
          %264 = dma.hbm_to_vmem [thread:$0]  %s3, 512, %s259, [#allocation6], 128, 128, 8
        $region24: #{tpu_custom_call.1} parent=11 // pred_fallthru
          _
        // Predicated region
        $region25: #{tpu_custom_call.1} parent=11 // pred_check
          %p265 = pneg %p132
        $region26: #{tpu_custom_call.1} parent=11 // pred_check_branch
          %267 = sbr.rel (%p265) target = $region28
        $region27: #{tpu_custom_call.1} parent=11 // pred_region
          _
        $region28: #{tpu_custom_call.1} parent=11 // pred_fallthru
          _
        // Predicated region
        $region29: #{tpu_custom_call.1} parent=11 // pred_check
          %p268 = pneg %p153
        $region30: #{tpu_custom_call.1} parent=11 // pred_check_branch
          %270 = sbr.rel (%p268) target = $region32
        $region31: #{tpu_custom_call.1} parent=11 // pred_region
          %s272 = ssub.s32 512, 512
          %273 = vsyncadd [#allocation9], %s272
          %s274 = sshll.u32 [#allocation8], 4
          %s275 = int_to_ptr.vmem [resolvable:$true] %s274
          %280 = dma.hbm_to_vmem [thread:$0]  %s5, 512, %s275, [#allocation9], 128, 128, 8
        $region32: #{tpu_custom_call.1} parent=11 // pred_fallthru
          _
        // Predicated region
        $region33: #{tpu_custom_call.1} parent=11 // pred_check
          %p281 = pneg %p174
        $region34: #{tpu_custom_call.1} parent=11 // pred_check_branch
          %283 = sbr.rel (%p281) target = $region36
        $region35: #{tpu_custom_call.1} parent=11 // pred_region
          %s285 = ssub.s32 512, 512
          %286 = vsyncadd [#allocation9], %s285
          %s287 = sshll.u32 [#allocation10], 4
          %s288 = int_to_ptr.vmem [resolvable:$true] %s287
          %293 = dma.hbm_to_vmem [thread:$0]  %s6, 512, %s288, [#allocation9], 128, 128, 8
        $region36: #{tpu_custom_call.1} parent=11 // pred_fallthru
          _
        // Predicated region
        $region37: #{tpu_custom_call.1} parent=11 // pred_check
          %p294 = pneg %p195
        $region38: #{tpu_custom_call.1} parent=11 // pred_check_branch
          %296 = sbr.rel (%p294) target = $region40
        $region39: #{tpu_custom_call.1} parent=11 // pred_region
          _
        $region40: #{tpu_custom_call.1} parent=11 // pred_fallthru
          _
      $region12: #{tpu_custom_call.1} parent=5 // pred_fallthru
        _
      %p297 = scmp.lt.s32.totalorder %s22, 2
      // Predicated region
      $region41: #{tpu_custom_call.1} parent=5 // pred_check
        %p298 = pneg %p297
      $region42: #{tpu_custom_call.1} parent=5 // pred_check_branch
        %300 = sbr.rel (%p298) target = $region44
      $region43: #{tpu_custom_call.1} parent=5 // pred_region
        // Predicated region
        $region45: #{tpu_custom_call.1} parent=43 // pred_check
          %p301 = pneg %p42
        $region46: #{tpu_custom_call.1} parent=43 // pred_check_branch
          %303 = sbr.rel (%p301) target = $region48
        $region47: #{tpu_custom_call.1} parent=43 // pred_region
          %s304 = sand.u32 %s32, 1
          %s305 = scalar_lea.sflag [#allocation3], %s304
          %s306 = sand.u32 %s32, 1
          %s307 = smul.addr %s306, 8
          %s308 = scalar_lea.vmem [#allocation2], %s307
          %s310 = ssub.s32 128, 128
          %311 = vsyncadd %s305, %s310
          %s312 = smul.addr %s22, 128
          %s313 = scalar_lea.hbm %s0, %s312
          %s315 = sshll.u32 %s308, 4
          %s316 = int_to_ptr.vmem [resolvable:$true] %s315
          %318 = dma.hbm_to_vmem [thread:$0]  %s313, 128, %s316, %s305
        $region48: #{tpu_custom_call.1} parent=43 // pred_fallthru
          _
      $region44: #{tpu_custom_call.1} parent=5 // pred_fallthru
        _
      %p319 = scmp.le.s32.totalorder 1, %s22
      %p320 = scmp.lt.s32.totalorder %s22, 3
      %p321 = pnand %p319, %p320
      %p322 = pneg %p321
      // Predicated region
      $region49: #{tpu_custom_call.1} parent=5 // pred_check
        _
      $region50: #{tpu_custom_call.1} parent=5 // pred_check_branch
        %324 = sbr.rel (%p321) target = $region52
      $region51: #{tpu_custom_call.1} parent=5 // pred_region
        %s325 = ssub.s32 %s22, 1
        %s326 = sand.u32 %s35, 1
        %s327 = scalar_lea.sflag [#allocation3], %s326
        %s328 = sand.u32 %s35, 1
        %s329 = smul.addr %s328, 8
        %s330 = scalar_lea.vmem [#allocation2], %s329
        // Predicated region
        $region53: #{tpu_custom_call.1} parent=51 // pred_check
          %p331 = pneg %p48
        $region54: #{tpu_custom_call.1} parent=51 // pred_check_branch
          %333 = sbr.rel (%p331) target = $region56
        $region55: #{tpu_custom_call.1} parent=51 // pred_region
          %334 = dma.done %s327, 128
        $region56: #{tpu_custom_call.1} parent=51 // pred_fallthru
          _
        // Predicated region
        $region57: #{tpu_custom_call.1} parent=51 // pred_check
          %p335 = pneg %p69
        $region58: #{tpu_custom_call.1} parent=51 // pred_check_branch
          %337 = sbr.rel (%p335) target = $region60
        $region59: #{tpu_custom_call.1} parent=51 // pred_region
          %338 = dma.done [#allocation6], 512
        $region60: #{tpu_custom_call.1} parent=51 // pred_fallthru
          _
        // Predicated region
        $region61: #{tpu_custom_call.1} parent=51 // pred_check
          %p339 = pneg %p111
        $region62: #{tpu_custom_call.1} parent=51 // pred_check_branch
          %341 = sbr.rel (%p339) target = $region64
        $region63: #{tpu_custom_call.1} parent=51 // pred_region
          %342 = dma.done [#allocation6], 512
        $region64: #{tpu_custom_call.1} parent=51 // pred_fallthru
          _
        // Predicated region
        $region65: #{tpu_custom_call.1} parent=51 // pred_check
          %p343 = pneg %p153
        $region66: #{tpu_custom_call.1} parent=51 // pred_check_branch
          %345 = sbr.rel (%p343) target = $region68
        $region67: #{tpu_custom_call.1} parent=51 // pred_region
          %346 = dma.done [#allocation9], 512
        $region68: #{tpu_custom_call.1} parent=51 // pred_fallthru
          _
        // Predicated region
        $region69: #{tpu_custom_call.1} parent=51 // pred_check
          %p347 = pneg %p174
        $region70: #{tpu_custom_call.1} parent=51 // pred_check_branch
          %349 = sbr.rel (%p347) target = $region72
        $region71: #{tpu_custom_call.1} parent=51 // pred_region
          %350 = dma.done [#allocation9], 512
        $region72: #{tpu_custom_call.1} parent=51 // pred_fallthru
          _
        %s351 = sand.u32 %s35, 1
        %s352 = scalar_lea.sflag [#allocation3], %s351
        %s353 = sand.u32 %s35, 1
        %s354 = smul.addr %s353, 8
        %s355 = scalar_lea.vmem [#allocation2], %s354
        %p356 = pneg %p48
        %p357 = pneg %p45
        %p358 = pneg %p69
        %p359 = pneg %p66
        %p360 = pneg %p90
        %p361 = pneg %p87
        %p362 = pneg %p111
        %p363 = pneg %p108
        %p364 = pneg %p132
        %p365 = pneg %p129
        %p366 = pneg %p153
        %p367 = pneg %p150
        %p368 = pneg %p174
        %p369 = pneg %p171
        %p370 = pneg %p195
        %p371 = pneg %p192
        %p372 = pneg %p221
        %p373 = pneg %p218
        %s374 = sand.u32 %s208, 1
        %s375 = scalar_lea.sflag [#allocation4], %s374
        %s376 = sand.u32 %s208, 1
        %s377 = smul.addr %s376, 8
        %s378 = scalar_lea.vmem [#allocation11], %s377
        %v379 = vld [vmem:[%s330] sm:$0xff]
        %v380 = vld [vmem:[#allocation5] sm:$0xff]
        %v381 = vld [vmem:[#allocation5 + $0x8] sm:$0xff]
        %v382 = vld [vmem:[#allocation5 + $0x10] sm:$0xff]
        %v383 = vld [vmem:[#allocation5 + $0x18] sm:$0xff]
        %v384 = vld [vmem:[%s2] sm:$0x1]
        %v386 = vlaneseq
        %v387 = vshrl.u32 %v386, 7
        %v388 = vsub.s32 0, %v387
        %v389 = vrot.slane %v384, %v388
        %vm391 = vcmask 261120
        %v393 = vsel %vm391, %v379, 0
        %395 = vmatprep.subr.mxu0 0.0
        %396 = vmatpush1.msra.mxu0 %v380
        %397 = vmatprep.subr.mxu0 0.0
        %398 = vmatpush1.msra.mxu0 %v381
        %399 = vmatprep.subr.mxu0 0.0
        %400 = vmatpush1.msra.mxu0 %v382
        %401 = vmatprep.subr.mxu0 0.0
        %402 = vmatpush1.msra.mxu0 %v383
        %403 = vmatprep.subr.mxu0 0.0
        %404 = vmatpush1.msra.mxu0 0.0
        %405 = vmatprep.subr.mxu0 0.0
        %406 = vmatpush1.msra.mxu0 0.0
        %407 = vmatprep.subr.mxu0 0.0
        %408 = vmatpush1.msra.mxu0 0.0
        %409 = vmatprep.subr.mxu0 0.0
        %410 = vmatpush1.msra.mxu0 0.0
        %411 = vmatprep.subr.mxu0 0.0
        %412 = vmatpush1.msra.mxu0 0.0
        %413 = vmatprep.subr.mxu0 0.0
        %414 = vmatpush1.msra.mxu0 0.0
        %415 = vmatprep.subr.mxu0 0.0
        %416 = vmatpush1.msra.mxu0 0.0
        %417 = vmatprep.subr.mxu0 0.0
        %418 = vmatpush1.msra.mxu0 0.0
        %419 = vmatprep.subr.mxu0 0.0
        %420 = vmatpush1.msra.mxu0 0.0
        %421 = vmatprep.subr.mxu0 0.0
        %422 = vmatpush1.msra.mxu0 0.0
        %423 = vmatprep.subr.mxu0 0.0
        %424 = vmatpush1.msra.mxu0 0.0
        %425 = vmatprep.subr.mxu0 0.0
        %426 = vmatpush1.msra.mxu0 0.0
        %427 = vmatprep.subr.mxu0 0.0
        %428 = vmatpush1.msra.mxu0 0.0
        %429 = vmatprep.subr.mxu0 0.0
        %430 = vmatpush1.msra.mxu0 0.0
        %431 = vmatprep.subr.mxu0 0.0
        %432 = vmatpush1.msra.mxu0 0.0
        %433 = vmatprep.subr.mxu0 0.0
        %434 = vmatpush1.msra.mxu0 0.0
        %435 = vmatprep.subr.mxu0 0.0
        %436 = vmatpush1.msra.mxu0 0.0
        %437 = vmatprep.subr.mxu0 0.0
        %438 = vmatpush1.msra.mxu0 0.0
        %439 = vmatprep.subr.mxu0 0.0
        %440 = vmatpush1.msra.mxu0 0.0
        %441 = vmatprep.subr.mxu0 0.0
        %442 = vmatpush1.msra.mxu0 0.0
        %443 = vmatprep.subr.mxu0 0.0
        %444 = vmatpush1.msra.mxu0 0.0
        %445 = vmatprep.subr.mxu0 0.0
        %446 = vmatpush1.msra.mxu0 0.0
        %447 = vmatprep.subr.mxu0 0.0
        %448 = vmatpush1.msra.mxu0 0.0
        %449 = vmatprep.subr.mxu0 0.0
        %450 = vmatpush1.msra.mxu0 0.0
        %451 = vmatprep.subr.mxu0 0.0
        %452 = vmatpush1.msra.mxu0 0.0
        %453 = vmatprep.subr.mxu0 0.0
        %454 = vmatpush1.msra.mxu0 0.0
        %455 = vmatprep.subr.mxu0 0.0
        %456 = vmatpush1.msra.mxu0 0.0
        %457 = vmatprep.subr.mxu0 0.0
        %458 = vmatpush1.msra.mxu0 0.0
        %459 = vmatprep.mubr.f32.mxu0 0.0
        %460 = vmatmul.mubr.f32.gmra.mrb[0].mxu0 %v393
        %v461 = vpop.f32.mrb[0].mxu0
        %v462 = vadd.f32 %v389, %v461
        %v463 = vpop.f32.mrb[0].mxu0
        %464 = vdwg.mxu0
        %v465 = vmax.f32 %v462, 0.0
        %v466 = vld [vmem:[#allocation7] sm:$0xff]
        %v467 = vld [vmem:[#allocation7 + $0x8] sm:$0xff]
        %v468 = vld [vmem:[#allocation7 + $0x10] sm:$0xff]
        %v469 = vld [vmem:[#allocation7 + $0x18] sm:$0xff]
        %v470 = vld [vmem:[%s4] sm:$0x1]
        %v472 = vlaneseq
        %v473 = vshrl.u32 %v472, 7
        %v474 = vsub.s32 0, %v473
        %v475 = vrot.slane %v470, %v474
        %v478 = vsel %vm391, %v465, 0
        %480 = vmatprep.subr.mxu0 0.0
        %481 = vmatpush1.msra.mxu0 %v466
        %482 = vmatprep.subr.mxu0 0.0
        %483 = vmatpush1.msra.mxu0 %v467
        %484 = vmatprep.subr.mxu0 0.0
        %485 = vmatpush1.msra.mxu0 %v468
        %486 = vmatprep.subr.mxu0 0.0
        %487 = vmatpush1.msra.mxu0 %v469
        %488 = vmatprep.subr.mxu0 0.0
        %489 = vmatpush1.msra.mxu0 0.0
        %490 = vmatprep.subr.mxu0 0.0
        %491 = vmatpush1.msra.mxu0 0.0
        %492 = vmatprep.subr.mxu0 0.0
        %493 = vmatpush1.msra.mxu0 0.0
        %494 = vmatprep.subr.mxu0 0.0
        %495 = vmatpush1.msra.mxu0 0.0
        %496 = vmatprep.subr.mxu0 0.0
        %497 = vmatpush1.msra.mxu0 0.0
        %498 = vmatprep.subr.mxu0 0.0
        %499 = vmatpush1.msra.mxu0 0.0
        %500 = vmatprep.subr.mxu0 0.0
        %501 = vmatpush1.msra.mxu0 0.0
        %502 = vmatprep.subr.mxu0 0.0
        %503 = vmatpush1.msra.mxu0 0.0
        %504 = vmatprep.subr.mxu0 0.0
        %505 = vmatpush1.msra.mxu0 0.0
        %506 = vmatprep.subr.mxu0 0.0
        %507 = vmatpush1.msra.mxu0 0.0
        %508 = vmatprep.subr.mxu0 0.0
        %509 = vmatpush1.msra.mxu0 0.0
        %510 = vmatprep.subr.mxu0 0.0
        %511 = vmatpush1.msra.mxu0 0.0
        %512 = vmatprep.subr.mxu0 0.0
        %513 = vmatpush1.msra.mxu0 0.0
        %514 = vmatprep.subr.mxu0 0.0
        %515 = vmatpush1.msra.mxu0 0.0
        %516 = vmatprep.subr.mxu0 0.0
        %517 = vmatpush1.msra.mxu0 0.0
        %518 = vmatprep.subr.mxu0 0.0
        %519 = vmatpush1.msra.mxu0 0.0
        %520 = vmatprep.subr.mxu0 0.0
        %521 = vmatpush1.msra.mxu0 0.0
        %522 = vmatprep.subr.mxu0 0.0
        %523 = vmatpush1.msra.mxu0 0.0
        %524 = vmatprep.subr.mxu0 0.0
        %525 = vmatpush1.msra.mxu0 0.0
        %526 = vmatprep.subr.mxu0 0.0
        %527 = vmatpush1.msra.mxu0 0.0
        %528 = vmatprep.subr.mxu0 0.0
        %529 = vmatpush1.msra.mxu0 0.0
        %530 = vmatprep.subr.mxu0 0.0
        %531 = vmatpush1.msra.mxu0 0.0
        %532 = vmatprep.subr.mxu0 0.0
        %533 = vmatpush1.msra.mxu0 0.0
        %534 = vmatprep.subr.mxu0 0.0
        %535 = vmatpush1.msra.mxu0 0.0
        %536 = vmatprep.subr.mxu0 0.0
        %537 = vmatpush1.msra.mxu0 0.0
        %538 = vmatprep.subr.mxu0 0.0
        %539 = vmatpush1.msra.mxu0 0.0
        %540 = vmatprep.subr.mxu0 0.0
        %541 = vmatpush1.msra.mxu0 0.0
        %542 = vmatprep.subr.mxu0 0.0
        %543 = vmatpush1.msra.mxu0 0.0
        %544 = vmatprep.mubr.f32.mxu0 0.0
        %545 = vmatmul.mubr.f32.gmra.mrb[0].mxu0 %v478
        %v546 = vpop.f32.mrb[0].mxu0
        %v547 = vadd.f32 %v475, %v546
        %v548 = vpop.f32.mrb[0].mxu0
        %549 = vdwg.mxu0
        %v550 = vld [vmem:[#allocation8] sm:$0xff]
        %v551 = vld [vmem:[#allocation8 + $0x8] sm:$0xff]
        %v552 = vld [vmem:[#allocation8 + $0x10] sm:$0xff]
        %v553 = vld [vmem:[#allocation8 + $0x18] sm:$0xff]
        %v554 = vld [vmem:[#allocation10] sm:$0xff]
        %v555 = vld [vmem:[#allocation10 + $0x8] sm:$0xff]
        %v556 = vld [vmem:[#allocation10 + $0x10] sm:$0xff]
        %v557 = vld [vmem:[#allocation10 + $0x18] sm:$0xff]
        %v558 = vld [vmem:[%s7] sm:$0x1]
        %v560 = vsel %vm391, 0.0, 0
        %562 = vmatprep.subr.mxu0 0.0
        %563 = vmatpush1.msra.mxu0 %v550
        %564 = vmatprep.subr.mxu0 0.0
        %565 = vmatpush1.msra.mxu0 %v551
        %566 = vmatprep.subr.mxu0 0.0
        %567 = vmatpush1.msra.mxu0 %v552
        %568 = vmatprep.subr.mxu0 0.0
        %569 = vmatpush1.msra.mxu0 %v553
        %570 = vmatprep.subr.mxu0 0.0
        %571 = vmatpush1.msra.mxu0 0.0
        %572 = vmatprep.subr.mxu0 0.0
        %573 = vmatpush1.msra.mxu0 0.0
        %574 = vmatprep.subr.mxu0 0.0
        %575 = vmatpush1.msra.mxu0 0.0
        %576 = vmatprep.subr.mxu0 0.0
        %577 = vmatpush1.msra.mxu0 0.0
        %578 = vmatprep.subr.mxu0 0.0
        %579 = vmatpush1.msra.mxu0 0.0
        %580 = vmatprep.subr.mxu0 0.0
        %581 = vmatpush1.msra.mxu0 0.0
        %582 = vmatprep.subr.mxu0 0.0
        %583 = vmatpush1.msra.mxu0 0.0
        %584 = vmatprep.subr.mxu0 0.0
        %585 = vmatpush1.msra.mxu0 0.0
        %586 = vmatprep.subr.mxu0 0.0
        %587 = vmatpush1.msra.mxu0 0.0
        %588 = vmatprep.subr.mxu0 0.0
        %589 = vmatpush1.msra.mxu0 0.0
        %590 = vmatprep.subr.mxu0 0.0
        %591 = vmatpush1.msra.mxu0 0.0
        %592 = vmatprep.subr.mxu0 0.0
        %593 = vmatpush1.msra.mxu0 0.0
        %594 = vmatprep.subr.mxu0 0.0
        %595 = vmatpush1.msra.mxu0 0.0
        %596 = vmatprep.subr.mxu0 0.0
        %597 = vmatpush1.msra.mxu0 0.0
        %598 = vmatprep.subr.mxu0 0.0
        %599 = vmatpush1.msra.mxu0 0.0
        %600 = vmatprep.subr.mxu0 0.0
        %601 = vmatpush1.msra.mxu0 0.0
        %602 = vmatprep.subr.mxu0 0.0
        %603 = vmatpush1.msra.mxu0 0.0
        %604 = vmatprep.subr.mxu0 0.0
        %605 = vmatpush1.msra.mxu0 0.0
        %606 = vmatprep.subr.mxu0 0.0
        %607 = vmatpush1.msra.mxu0 0.0
        %608 = vmatprep.subr.mxu0 0.0
        %609 = vmatpush1.msra.mxu0 0.0
        %610 = vmatprep.subr.mxu0 0.0
        %611 = vmatpush1.msra.mxu0 0.0
        %612 = vmatprep.subr.mxu0 0.0
        %613 = vmatpush1.msra.mxu0 0.0
        %614 = vmatprep.subr.mxu0 0.0
        %615 = vmatpush1.msra.mxu0 0.0
        %616 = vmatprep.subr.mxu0 0.0
        %617 = vmatpush1.msra.mxu0 0.0
        %618 = vmatprep.subr.mxu0 0.0
        %619 = vmatpush1.msra.mxu0 0.0
        %620 = vmatprep.subr.mxu0 0.0
        %621 = vmatpush1.msra.mxu0 0.0
        %622 = vmatprep.subr.mxu0 0.0
        %623 = vmatpush1.msra.mxu0 0.0
        %624 = vmatprep.subr.mxu0 0.0
        %625 = vmatpush1.msra.mxu0 0.0
        %626 = vmatprep.mubr.f32.mxu0 0.0
        %627 = vmatmul.mubr.f32.gmra.mrb[0].mxu0 %v560
        %v628 = vpop.f32.mrb[0].mxu0
        %v629 = vadd.f32 0.0, %v628
        %v630 = vpop.f32.mrb[0].mxu0
        %631 = vdwg.mxu0
        %v632 = vadd.f32 %v547, %v629
        %v633 = vtanh.pop %v632
        %v634 = vmul.f32 %v633, 0.5
        %v635 = vmul.f32 %v633, 0.70710677
        %v636 = verf.f32.pop %v635
        %v637 = vadd.f32 %v636, 1.0
        %v638 = vmul.f32 %v634, %v637
        %v640 = vsel %vm391, %v638, 0
        %642 = vmatprep.subr.mxu0 0.0
        %643 = vmatpush1.msra.mxu0 %v554
        %644 = vmatprep.subr.mxu0 0.0
        %645 = vmatpush1.msra.mxu0 %v555
        %646 = vmatprep.subr.mxu0 0.0
        %647 = vmatpush1.msra.mxu0 %v556
        %648 = vmatprep.subr.mxu0 0.0
        %649 = vmatpush1.msra.mxu0 %v557
        %650 = vmatprep.subr.mxu0 0.0
        %651 = vmatpush1.msra.mxu0 0.0
        %652 = vmatprep.subr.mxu0 0.0
        %653 = vmatpush1.msra.mxu0 0.0
        %654 = vmatprep.subr.mxu0 0.0
        %655 = vmatpush1.msra.mxu0 0.0
        %656 = vmatprep.subr.mxu0 0.0
        %657 = vmatpush1.msra.mxu0 0.0
        %658 = vmatprep.subr.mxu0 0.0
        %659 = vmatpush1.msra.mxu0 0.0
        %660 = vmatprep.subr.mxu0 0.0
        %661 = vmatpush1.msra.mxu0 0.0
        %662 = vmatprep.subr.mxu0 0.0
        %663 = vmatpush1.msra.mxu0 0.0
        %664 = vmatprep.subr.mxu0 0.0
        %665 = vmatpush1.msra.mxu0 0.0
        %666 = vmatprep.subr.mxu0 0.0
        %667 = vmatpush1.msra.mxu0 0.0
        %668 = vmatprep.subr.mxu0 0.0
        %669 = vmatpush1.msra.mxu0 0.0
        %670 = vmatprep.subr.mxu0 0.0
        %671 = vmatpush1.msra.mxu0 0.0
        %672 = vmatprep.subr.mxu0 0.0
        %673 = vmatpush1.msra.mxu0 0.0
        %674 = vmatprep.subr.mxu0 0.0
        %675 = vmatpush1.msra.mxu0 0.0
        %676 = vmatprep.subr.mxu0 0.0
        %677 = vmatpush1.msra.mxu0 0.0
        %678 = vmatprep.subr.mxu0 0.0
        %679 = vmatpush1.msra.mxu0 0.0
        %680 = vmatprep.subr.mxu0 0.0
        %681 = vmatpush1.msra.mxu0 0.0
        %682 = vmatprep.subr.mxu0 0.0
        %683 = vmatpush1.msra.mxu0 0.0
        %684 = vmatprep.subr.mxu0 0.0
        %685 = vmatpush1.msra.mxu0 0.0
        %686 = vmatprep.subr.mxu0 0.0
        %687 = vmatpush1.msra.mxu0 0.0
        %688 = vmatprep.subr.mxu0 0.0
        %689 = vmatpush1.msra.mxu0 0.0
        %690 = vmatprep.subr.mxu0 0.0
        %691 = vmatpush1.msra.mxu0 0.0
        %692 = vmatprep.subr.mxu0 0.0
        %693 = vmatpush1.msra.mxu0 0.0
        %694 = vmatprep.subr.mxu0 0.0
        %695 = vmatpush1.msra.mxu0 0.0
        %696 = vmatprep.subr.mxu0 0.0
        %697 = vmatpush1.msra.mxu0 0.0
        %698 = vmatprep.subr.mxu0 0.0
        %699 = vmatpush1.msra.mxu0 0.0
        %700 = vmatprep.subr.mxu0 0.0
        %701 = vmatpush1.msra.mxu0 0.0
        %702 = vmatprep.subr.mxu0 0.0
        %703 = vmatpush1.msra.mxu0 0.0
        %704 = vmatprep.subr.mxu0 0.0
        %705 = vmatpush1.msra.mxu0 0.0
        %706 = vmatprep.mubr.f32.mxu0 0.0
        %707 = vmatmul.mubr.f32.gmra.mrb[0].mxu0 %v640
        %v708 = vpop.f32.mrb[0].mxu0
        %v709 = vadd.f32 %v558, %v708
        %v710 = vpop.f32.mrb[0].mxu0
        %711 = vdwg.mxu0
        %v712 = vadd.f32 %v379, %v709
        %vm713 = vcmask 253952
        %714 = vst.msk [vmem:[%s378] sm:$0x1] %vm713, %v712
        %v716 = vsel %vm391, %v633, 0
        %718 = vmatprep.subr.mxu0 0.0
        %719 = vmatpush1.msra.mxu0 %v550
        %720 = vmatprep.subr.mxu0 0.0
        %721 = vmatpush1.msra.mxu0 %v551
        %722 = vmatprep.subr.mxu0 0.0
        %723 = vmatpush1.msra.mxu0 %v552
        %724 = vmatprep.subr.mxu0 0.0
        %725 = vmatpush1.msra.mxu0 %v553
        %726 = vmatprep.subr.mxu0 0.0
        %727 = vmatpush1.msra.mxu0 0.0
        %728 = vmatprep.subr.mxu0 0.0
        %729 = vmatpush1.msra.mxu0 0.0
        %730 = vmatprep.subr.mxu0 0.0
        %731 = vmatpush1.msra.mxu0 0.0
        %732 = vmatprep.subr.mxu0 0.0
        %733 = vmatpush1.msra.mxu0 0.0
        %734 = vmatprep.subr.mxu0 0.0
        %735 = vmatpush1.msra.mxu0 0.0
        %736 = vmatprep.subr.mxu0 0.0
        %737 = vmatpush1.msra.mxu0 0.0
        %738 = vmatprep.subr.mxu0 0.0
        %739 = vmatpush1.msra.mxu0 0.0
        %740 = vmatprep.subr.mxu0 0.0
        %741 = vmatpush1.msra.mxu0 0.0
        %742 = vmatprep.subr.mxu0 0.0
        %743 = vmatpush1.msra.mxu0 0.0
        %744 = vmatprep.subr.mxu0 0.0
        %745 = vmatpush1.msra.mxu0 0.0
        %746 = vmatprep.subr.mxu0 0.0
        %747 = vmatpush1.msra.mxu0 0.0
        %748 = vmatprep.subr.mxu0 0.0
        %749 = vmatpush1.msra.mxu0 0.0
        %750 = vmatprep.subr.mxu0 0.0
        %751 = vmatpush1.msra.mxu0 0.0
        %752 = vmatprep.subr.mxu0 0.0
        %753 = vmatpush1.msra.mxu0 0.0
        %754 = vmatprep.subr.mxu0 0.0
        %755 = vmatpush1.msra.mxu0 0.0
        %756 = vmatprep.subr.mxu0 0.0
        %757 = vmatpush1.msra.mxu0 0.0
        %758 = vmatprep.subr.mxu0 0.0
        %759 = vmatpush1.msra.mxu0 0.0
        %760 = vmatprep.subr.mxu0 0.0
        %761 = vmatpush1.msra.mxu0 0.0
        %762 = vmatprep.subr.mxu0 0.0
        %763 = vmatpush1.msra.mxu0 0.0
        %764 = vmatprep.subr.mxu0 0.0
        %765 = vmatpush1.msra.mxu0 0.0
        %766 = vmatprep.subr.mxu0 0.0
        %767 = vmatpush1.msra.mxu0 0.0
        %768 = vmatprep.subr.mxu0 0.0
        %769 = vmatpush1.msra.mxu0 0.0
        %770 = vmatprep.subr.mxu0 0.0
        %771 = vmatpush1.msra.mxu0 0.0
        %772 = vmatprep.subr.mxu0 0.0
        %773 = vmatpush1.msra.mxu0 0.0
        %774 = vmatprep.subr.mxu0 0.0
        %775 = vmatpush1.msra.mxu0 0.0
        %776 = vmatprep.subr.mxu0 0.0
        %777 = vmatpush1.msra.mxu0 0.0
        %778 = vmatprep.subr.mxu0 0.0
        %779 = vmatpush1.msra.mxu0 0.0
        %780 = vmatprep.subr.mxu0 0.0
        %781 = vmatpush1.msra.mxu0 0.0
        %782 = vmatprep.mubr.f32.mxu0 0.0
        %783 = vmatmul.mubr.f32.gmra.mrb[0].mxu0 %v716
        %v784 = vpop.f32.mrb[0].mxu0
        %v785 = vadd.f32 0.0, %v784
        %v786 = vpop.f32.mrb[0].mxu0
        %787 = vdwg.mxu0
        %v789 = vrot.slane %v785, 7
        %v791 = vadd.f32 %v547, %v789
        %v792 = vtanh.pop %v791
        %v793 = vmul.f32 %v792, 0.5
        %v794 = vmul.f32 %v792, 0.70710677
        %v795 = verf.f32.pop %v794
        %v796 = vadd.f32 %v795, 1.0
        %v797 = vmul.f32 %v793, %v796
        %v799 = vrot.slane %v797, 1
        %v800 = vsel %vm391, %v799, 0
        %802 = vmatprep.subr.mxu0 0.0
        %803 = vmatpush1.msra.mxu0 %v554
        %804 = vmatprep.subr.mxu0 0.0
        %805 = vmatpush1.msra.mxu0 %v555
        %806 = vmatprep.subr.mxu0 0.0
        %807 = vmatpush1.msra.mxu0 %v556
        %808 = vmatprep.subr.mxu0 0.0
        %809 = vmatpush1.msra.mxu0 %v557
        %810 = vmatprep.subr.mxu0 0.0
        %811 = vmatpush1.msra.mxu0 0.0
        %812 = vmatprep.subr.mxu0 0.0
        %813 = vmatpush1.msra.mxu0 0.0
        %814 = vmatprep.subr.mxu0 0.0
        %815 = vmatpush1.msra.mxu0 0.0
        %816 = vmatprep.subr.mxu0 0.0
        %817 = vmatpush1.msra.mxu0 0.0
        %818 = vmatprep.subr.mxu0 0.0
        %819 = vmatpush1.msra.mxu0 0.0
        %820 = vmatprep.subr.mxu0 0.0
        %821 = vmatpush1.msra.mxu0 0.0
        %822 = vmatprep.subr.mxu0 0.0
        %823 = vmatpush1.msra.mxu0 0.0
        %824 = vmatprep.subr.mxu0 0.0
        %825 = vmatpush1.msra.mxu0 0.0
        %826 = vmatprep.subr.mxu0 0.0
        %827 = vmatpush1.msra.mxu0 0.0
        %828 = vmatprep.subr.mxu0 0.0
        %829 = vmatpush1.msra.mxu0 0.0
        %830 = vmatprep.subr.mxu0 0.0
        %831 = vmatpush1.msra.mxu0 0.0
        %832 = vmatprep.subr.mxu0 0.0
        %833 = vmatpush1.msra.mxu0 0.0
        %834 = vmatprep.subr.mxu0 0.0
        %835 = vmatpush1.msra.mxu0 0.0
        %836 = vmatprep.subr.mxu0 0.0
        %837 = vmatpush1.msra.mxu0 0.0
        %838 = vmatprep.subr.mxu0 0.0
        %839 = vmatpush1.msra.mxu0 0.0
        %840 = vmatprep.subr.mxu0 0.0
        %841 = vmatpush1.msra.mxu0 0.0
        %842 = vmatprep.subr.mxu0 0.0
        %843 = vmatpush1.msra.mxu0 0.0
        %844 = vmatprep.subr.mxu0 0.0
        %845 = vmatpush1.msra.mxu0 0.0
        %846 = vmatprep.subr.mxu0 0.0
        %847 = vmatpush1.msra.mxu0 0.0
        %848 = vmatprep.subr.mxu0 0.0
        %849 = vmatpush1.msra.mxu0 0.0
        %850 = vmatprep.subr.mxu0 0.0
        %851 = vmatpush1.msra.mxu0 0.0
        %852 = vmatprep.subr.mxu0 0.0
        %853 = vmatpush1.msra.mxu0 0.0
        %854 = vmatprep.subr.mxu0 0.0
        %855 = vmatpush1.msra.mxu0 0.0
        %856 = vmatprep.subr.mxu0 0.0
        %857 = vmatpush1.msra.mxu0 0.0
        %858 = vmatprep.subr.mxu0 0.0
        %859 = vmatpush1.msra.mxu0 0.0
        %860 = vmatprep.subr.mxu0 0.0
        %861 = vmatpush1.msra.mxu0 0.0
        %862 = vmatprep.subr.mxu0 0.0
        %863 = vmatpush1.msra.mxu0 0.0
        %864 = vmatprep.subr.mxu0 0.0
        %865 = vmatpush1.msra.mxu0 0.0
        %866 = vmatprep.mubr.f32.mxu0 0.0
        %867 = vmatmul.mubr.f32.gmra.mrb[0].mxu0 %v800
        %v868 = vpop.f32.mrb[0].mxu0
        %v869 = vadd.f32 %v558, %v868
        %v870 = vpop.f32.mrb[0].mxu0
        %871 = vdwg.mxu0
        %v873 = vrot.slane %v869, 7
        %v875 = vadd.f32 %v379, %v873
        %vm876 = vcmask 254977
        %877 = vst.msk [vmem:[%s378] sm:$0x2] %vm876, %v875
        %v879 = vrot.slane %v792, 1
        %v880 = vsel %vm391, %v879, 0
        %882 = vmatprep.subr.mxu0 0.0
        %883 = vmatpush1.msra.mxu0 %v550
        %884 = vmatprep.subr.mxu0 0.0
        %885 = vmatpush1.msra.mxu0 %v551
        %886 = vmatprep.subr.mxu0 0.0
        %887 = vmatpush1.msra.mxu0 %v552
        %888 = vmatprep.subr.mxu0 0.0
        %889 = vmatpush1.msra.mxu0 %v553
        %890 = vmatprep.subr.mxu0 0.0
        %891 = vmatpush1.msra.mxu0 0.0
        %892 = vmatprep.subr.mxu0 0.0
        %893 = vmatpush1.msra.mxu0 0.0
        %894 = vmatprep.subr.mxu0 0.0
        %895 = vmatpush1.msra.mxu0 0.0
        %896 = vmatprep.subr.mxu0 0.0
        %897 = vmatpush1.msra.mxu0 0.0
        %898 = vmatprep.subr.mxu0 0.0
        %899 = vmatpush1.msra.mxu0 0.0
        %900 = vmatprep.subr.mxu0 0.0
        %901 = vmatpush1.msra.mxu0 0.0
        %902 = vmatprep.subr.mxu0 0.0
        %903 = vmatpush1.msra.mxu0 0.0
        %904 = vmatprep.subr.mxu0 0.0
        %905 = vmatpush1.msra.mxu0 0.0
        %906 = vmatprep.subr.mxu0 0.0
        %907 = vmatpush1.msra.mxu0 0.0
        %908 = vmatprep.subr.mxu0 0.0
        %909 = vmatpush1.msra.mxu0 0.0
        %910 = vmatprep.subr.mxu0 0.0
        %911 = vmatpush1.msra.mxu0 0.0
        %912 = vmatprep.subr.mxu0 0.0
        %913 = vmatpush1.msra.mxu0 0.0
        %914 = vmatprep.subr.mxu0 0.0
        %915 = vmatpush1.msra.mxu0 0.0
        %916 = vmatprep.subr.mxu0 0.0
        %917 = vmatpush1.msra.mxu0 0.0
        %918 = vmatprep.subr.mxu0 0.0
        %919 = vmatpush1.msra.mxu0 0.0
        %920 = vmatprep.subr.mxu0 0.0
        %921 = vmatpush1.msra.mxu0 0.0
        %922 = vmatprep.subr.mxu0 0.0
        %923 = vmatpush1.msra.mxu0 0.0
        %924 = vmatprep.subr.mxu0 0.0
        %925 = vmatpush1.msra.mxu0 0.0
        %926 = vmatprep.subr.mxu0 0.0
        %927 = vmatpush1.msra.mxu0 0.0
        %928 = vmatprep.subr.mxu0 0.0
        %929 = vmatpush1.msra.mxu0 0.0
        %930 = vmatprep.subr.mxu0 0.0
        %931 = vmatpush1.msra.mxu0 0.0
        %932 = vmatprep.subr.mxu0 0.0
        %933 = vmatpush1.msra.mxu0 0.0
        %934 = vmatprep.subr.mxu0 0.0
        %935 = vmatpush1.msra.mxu0 0.0
        %936 = vmatprep.subr.mxu0 0.0
        %937 = vmatpush1.msra.mxu0 0.0
        %938 = vmatprep.subr.mxu0 0.0
        %939 = vmatpush1.msra.mxu0 0.0
        %940 = vmatprep.subr.mxu0 0.0
        %941 = vmatpush1.msra.mxu0 0.0
        %942 = vmatprep.subr.mxu0 0.0
        %943 = vmatpush1.msra.mxu0 0.0
        %944 = vmatprep.subr.mxu0 0.0
        %945 = vmatpush1.msra.mxu0 0.0
        %946 = vmatprep.mubr.f32.mxu0 0.0
        %947 = vmatmul.mubr.f32.gmra.mrb[0].mxu0 %v880
        %v948 = vpop.f32.mrb[0].mxu0
        %v949 = vadd.f32 0.0, %v948
        %v950 = vpop.f32.mrb[0].mxu0
        %951 = vdwg.mxu0
        %v953 = vrot.slane %v949, 6
        %v955 = vadd.f32 %v547, %v953
        %v956 = vtanh.pop %v955
        %v957 = vmul.f32 %v956, 0.5
        %v958 = vmul.f32 %v956, 0.70710677
        %v959 = verf.f32.pop %v958
        %v960 = vadd.f32 %v959, 1.0
        %v961 = vmul.f32 %v957, %v960
        %v963 = vrot.slane %v961, 2
        %v964 = vsel %vm391, %v963, 0
        %966 = vmatprep.subr.mxu0 0.0
        %967 = vmatpush1.msra.mxu0 %v554
        %968 = vmatprep.subr.mxu0 0.0
        %969 = vmatpush1.msra.mxu0 %v555
        %970 = vmatprep.subr.mxu0 0.0
        %971 = vmatpush1.msra.mxu0 %v556
        %972 = vmatprep.subr.mxu0 0.0
        %973 = vmatpush1.msra.mxu0 %v557
        %974 = vmatprep.subr.mxu0 0.0
        %975 = vmatpush1.msra.mxu0 0.0
        %976 = vmatprep.subr.mxu0 0.0
        %977 = vmatpush1.msra.mxu0 0.0
        %978 = vmatprep.subr.mxu0 0.0
        %979 = vmatpush1.msra.mxu0 0.0
        %980 = vmatprep.subr.mxu0 0.0
        %981 = vmatpush1.msra.mxu0 0.0
        %982 = vmatprep.subr.mxu0 0.0
        %983 = vmatpush1.msra.mxu0 0.0
        %984 = vmatprep.subr.mxu0 0.0
        %985 = vmatpush1.msra.mxu0 0.0
        %986 = vmatprep.subr.mxu0 0.0
        %987 = vmatpush1.msra.mxu0 0.0
        %988 = vmatprep.subr.mxu0 0.0
        %989 = vmatpush1.msra.mxu0 0.0
        %990 = vmatprep.subr.mxu0 0.0
        %991 = vmatpush1.msra.mxu0 0.0
        %992 = vmatprep.subr.mxu0 0.0
        %993 = vmatpush1.msra.mxu0 0.0
        %994 = vmatprep.subr.mxu0 0.0
        %995 = vmatpush1.msra.mxu0 0.0
        %996 = vmatprep.subr.mxu0 0.0
        %997 = vmatpush1.msra.mxu0 0.0
        %998 = vmatprep.subr.mxu0 0.0
        %999 = vmatpush1.msra.mxu0 0.0
        %1000 = vmatprep.subr.mxu0 0.0
        %1001 = vmatpush1.msra.mxu0 0.0
        %1002 = vmatprep.subr.mxu0 0.0
        %1003 = vmatpush1.msra.mxu0 0.0
        %1004 = vmatprep.subr.mxu0 0.0
        %1005 = vmatpush1.msra.mxu0 0.0
        %1006 = vmatprep.subr.mxu0 0.0
        %1007 = vmatpush1.msra.mxu0 0.0
        %1008 = vmatprep.subr.mxu0 0.0
        %1009 = vmatpush1.msra.mxu0 0.0
        %1010 = vmatprep.subr.mxu0 0.0
        %1011 = vmatpush1.msra.mxu0 0.0
        %1012 = vmatprep.subr.mxu0 0.0
        %1013 = vmatpush1.msra.mxu0 0.0
        %1014 = vmatprep.subr.mxu0 0.0
        %1015 = vmatpush1.msra.mxu0 0.0
        %1016 = vmatprep.subr.mxu0 0.0
        %1017 = vmatpush1.msra.mxu0 0.0
        %1018 = vmatprep.subr.mxu0 0.0
        %1019 = vmatpush1.msra.mxu0 0.0
        %1020 = vmatprep.subr.mxu0 0.0
        %1021 = vmatpush1.msra.mxu0 0.0
        %1022 = vmatprep.subr.mxu0 0.0
        %1023 = vmatpush1.msra.mxu0 0.0
        %1024 = vmatprep.subr.mxu0 0.0
        %1025 = vmatpush1.msra.mxu0 0.0
        %1026 = vmatprep.subr.mxu0 0.0
        %1027 = vmatpush1.msra.mxu0 0.0
        %1028 = vmatprep.subr.mxu0 0.0
        %1029 = vmatpush1.msra.mxu0 0.0
        %1030 = vmatprep.mubr.f32.mxu0 0.0
        %1031 = vmatmul.mubr.f32.gmra.mrb[0].mxu0 %v964
        %v1032 = vpop.f32.mrb[0].mxu0
        %v1033 = vadd.f32 %v558, %v1032
        %v1034 = vpop.f32.mrb[0].mxu0
        %1035 = vdwg.mxu0
        %v1037 = vrot.slane %v1033, 6
        %v1039 = vadd.f32 %v379, %v1037
        %vm1040 = vcmask 256002
        %1041 = vst.msk [vmem:[%s378] sm:$0x4] %vm1040, %v1039
        %v1043 = vrot.slane %v956, 2
        %v1044 = vsel %vm391, %v1043, 0
        %1046 = vmatprep.subr.mxu0 0.0
        %1047 = vmatpush1.msra.mxu0 %v550
        %1048 = vmatprep.subr.mxu0 0.0
        %1049 = vmatpush1.msra.mxu0 %v551
        %1050 = vmatprep.subr.mxu0 0.0
        %1051 = vmatpush1.msra.mxu0 %v552
        %1052 = vmatprep.subr.mxu0 0.0
        %1053 = vmatpush1.msra.mxu0 %v553
        %1054 = vmatprep.subr.mxu0 0.0
        %1055 = vmatpush1.msra.mxu0 0.0
        %1056 = vmatprep.subr.mxu0 0.0
        %1057 = vmatpush1.msra.mxu0 0.0
        %1058 = vmatprep.subr.mxu0 0.0
        %1059 = vmatpush1.msra.mxu0 0.0
        %1060 = vmatprep.subr.mxu0 0.0
        %1061 = vmatpush1.msra.mxu0 0.0
        %1062 = vmatprep.subr.mxu0 0.0
        %1063 = vmatpush1.msra.mxu0 0.0
        %1064 = vmatprep.subr.mxu0 0.0
        %1065 = vmatpush1.msra.mxu0 0.0
        %1066 = vmatprep.subr.mxu0 0.0
        %1067 = vmatpush1.msra.mxu0 0.0
        %1068 = vmatprep.subr.mxu0 0.0
        %1069 = vmatpush1.msra.mxu0 0.0
        %1070 = vmatprep.subr.mxu0 0.0
        %1071 = vmatpush1.msra.mxu0 0.0
        %1072 = vmatprep.subr.mxu0 0.0
        %1073 = vmatpush1.msra.mxu0 0.0
        %1074 = vmatprep.subr.mxu0 0.0
        %1075 = vmatpush1.msra.mxu0 0.0
        %1076 = vmatprep.subr.mxu0 0.0
        %1077 = vmatpush1.msra.mxu0 0.0
        %1078 = vmatprep.subr.mxu0 0.0
        %1079 = vmatpush1.msra.mxu0 0.0
        %1080 = vmatprep.subr.mxu0 0.0
        %1081 = vmatpush1.msra.mxu0 0.0
        %1082 = vmatprep.subr.mxu0 0.0
        %1083 = vmatpush1.msra.mxu0 0.0
        %1084 = vmatprep.subr.mxu0 0.0
        %1085 = vmatpush1.msra.mxu0 0.0
        %1086 = vmatprep.subr.mxu0 0.0
        %1087 = vmatpush1.msra.mxu0 0.0
        %1088 = vmatprep.subr.mxu0 0.0
        %1089 = vmatpush1.msra.mxu0 0.0
        %1090 = vmatprep.subr.mxu0 0.0
        %1091 = vmatpush1.msra.mxu0 0.0
        %1092 = vmatprep.subr.mxu0 0.0
        %1093 = vmatpush1.msra.mxu0 0.0
        %1094 = vmatprep.subr.mxu0 0.0
        %1095 = vmatpush1.msra.mxu0 0.0
        %1096 = vmatprep.subr.mxu0 0.0
        %1097 = vmatpush1.msra.mxu0 0.0
        %1098 = vmatprep.subr.mxu0 0.0
        %1099 = vmatpush1.msra.mxu0 0.0
        %1100 = vmatprep.subr.mxu0 0.0
        %1101 = vmatpush1.msra.mxu0 0.0
        %1102 = vmatprep.subr.mxu0 0.0
        %1103 = vmatpush1.msra.mxu0 0.0
        %1104 = vmatprep.subr.mxu0 0.0
        %1105 = vmatpush1.msra.mxu0 0.0
        %1106 = vmatprep.subr.mxu0 0.0
        %1107 = vmatpush1.msra.mxu0 0.0
        %1108 = vmatprep.subr.mxu0 0.0
        %1109 = vmatpush1.msra.mxu0 0.0
        %1110 = vmatprep.mubr.f32.mxu0 0.0
        %1111 = vmatmul.mubr.f32.gmra.mrb[0].mxu0 %v1044
        %v1112 = vpop.f32.mrb[0].mxu0
        %v1113 = vadd.f32 0.0, %v1112
        %v1114 = vpop.f32.mrb[0].mxu0
        %1115 = vdwg.mxu0
        %v1117 = vrot.slane %v1113, 5
        %v1119 = vadd.f32 %v547, %v1117
        %v1120 = vtanh.pop %v1119
        %v1121 = vmul.f32 %v1120, 0.5
        %v1122 = vmul.f32 %v1120, 0.70710677
        %v1123 = verf.f32.pop %v1122
        %v1124 = vadd.f32 %v1123, 1.0
        %v1125 = vmul.f32 %v1121, %v1124
        %v1127 = vrot.slane %v1125, 3
        %v1128 = vsel %vm391, %v1127, 0
        %1130 = vmatprep.subr.mxu0 0.0
        %1131 = vmatpush1.msra.mxu0 %v554
        %1132 = vmatprep.subr.mxu0 0.0
        %1133 = vmatpush1.msra.mxu0 %v555
        %1134 = vmatprep.subr.mxu0 0.0
        %1135 = vmatpush1.msra.mxu0 %v556
        %1136 = vmatprep.subr.mxu0 0.0
        %1137 = vmatpush1.msra.mxu0 %v557
        %1138 = vmatprep.subr.mxu0 0.0
        %1139 = vmatpush1.msra.mxu0 0.0
        %1140 = vmatprep.subr.mxu0 0.0
        %1141 = vmatpush1.msra.mxu0 0.0
        %1142 = vmatprep.subr.mxu0 0.0
        %1143 = vmatpush1.msra.mxu0 0.0
        %1144 = vmatprep.subr.mxu0 0.0
        %1145 = vmatpush1.msra.mxu0 0.0
        %1146 = vmatprep.subr.mxu0 0.0
        %1147 = vmatpush1.msra.mxu0 0.0
        %1148 = vmatprep.subr.mxu0 0.0
        %1149 = vmatpush1.msra.mxu0 0.0
        %1150 = vmatprep.subr.mxu0 0.0
        %1151 = vmatpush1.msra.mxu0 0.0
        %1152 = vmatprep.subr.mxu0 0.0
        %1153 = vmatpush1.msra.mxu0 0.0
        %1154 = vmatprep.subr.mxu0 0.0
        %1155 = vmatpush1.msra.mxu0 0.0
        %1156 = vmatprep.subr.mxu0 0.0
        %1157 = vmatpush1.msra.mxu0 0.0
        %1158 = vmatprep.subr.mxu0 0.0
        %1159 = vmatpush1.msra.mxu0 0.0
        %1160 = vmatprep.subr.mxu0 0.0
        %1161 = vmatpush1.msra.mxu0 0.0
        %1162 = vmatprep.subr.mxu0 0.0
        %1163 = vmatpush1.msra.mxu0 0.0
        %1164 = vmatprep.subr.mxu0 0.0
        %1165 = vmatpush1.msra.mxu0 0.0
        %1166 = vmatprep.subr.mxu0 0.0
        %1167 = vmatpush1.msra.mxu0 0.0
        %1168 = vmatprep.subr.mxu0 0.0
        %1169 = vmatpush1.msra.mxu0 0.0
        %1170 = vmatprep.subr.mxu0 0.0
        %1171 = vmatpush1.msra.mxu0 0.0
        %1172 = vmatprep.subr.mxu0 0.0
        %1173 = vmatpush1.msra.mxu0 0.0
        %1174 = vmatprep.subr.mxu0 0.0
        %1175 = vmatpush1.msra.mxu0 0.0
        %1176 = vmatprep.subr.mxu0 0.0
        %1177 = vmatpush1.msra.mxu0 0.0
        %1178 = vmatprep.subr.mxu0 0.0
        %1179 = vmatpush1.msra.mxu0 0.0
        %1180 = vmatprep.subr.mxu0 0.0
        %1181 = vmatpush1.msra.mxu0 0.0
        %1182 = vmatprep.subr.mxu0 0.0
        %1183 = vmatpush1.msra.mxu0 0.0
        %1184 = vmatprep.subr.mxu0 0.0
        %1185 = vmatpush1.msra.mxu0 0.0
        %1186 = vmatprep.subr.mxu0 0.0
        %1187 = vmatpush1.msra.mxu0 0.0
        %1188 = vmatprep.subr.mxu0 0.0
        %1189 = vmatpush1.msra.mxu0 0.0
        %1190 = vmatprep.subr.mxu0 0.0
        %1191 = vmatpush1.msra.mxu0 0.0
        %1192 = vmatprep.subr.mxu0 0.0
        %1193 = vmatpush1.msra.mxu0 0.0
        %1194 = vmatprep.mubr.f32.mxu0 0.0
        %1195 = vmatmul.mubr.f32.gmra.mrb[0].mxu0 %v1128
        %v1196 = vpop.f32.mrb[0].mxu0
        %v1197 = vadd.f32 %v558, %v1196
        %v1198 = vpop.f32.mrb[0].mxu0
        %1199 = vdwg.mxu0
        %v1201 = vrot.slane %v1197, 5
        %v1203 = vadd.f32 %v379, %v1201
        %vm1204 = vcmask 257027
        %1205 = vst.msk [vmem:[%s378] sm:$0x8] %vm1204, %v1203
        %v1207 = vrot.slane %v1120, 3
        %v1208 = vsel %vm391, %v1207, 0
        %1210 = vmatprep.subr.mxu0 0.0
        %1211 = vmatpush1.msra.mxu0 %v550
        %1212 = vmatprep.subr.mxu0 0.0
        %1213 = vmatpush1.msra.mxu0 %v551
        %1214 = vmatprep.subr.mxu0 0.0
        %1215 = vmatpush1.msra.mxu0 %v552
        %1216 = vmatprep.subr.mxu0 0.0
        %1217 = vmatpush1.msra.mxu0 %v553
        %1218 = vmatprep.subr.mxu0 0.0
        %1219 = vmatpush1.msra.mxu0 0.0
        %1220 = vmatprep.subr.mxu0 0.0
        %1221 = vmatpush1.msra.mxu0 0.0
        %1222 = vmatprep.subr.mxu0 0.0
        %1223 = vmatpush1.msra.mxu0 0.0
        %1224 = vmatprep.subr.mxu0 0.0
        %1225 = vmatpush1.msra.mxu0 0.0
        %1226 = vmatprep.subr.mxu0 0.0
        %1227 = vmatpush1.msra.mxu0 0.0
        %1228 = vmatprep.subr.mxu0 0.0
        %1229 = vmatpush1.msra.mxu0 0.0
        %1230 = vmatprep.subr.mxu0 0.0
        %1231 = vmatpush1.msra.mxu0 0.0
        %1232 = vmatprep.subr.mxu0 0.0
        %1233 = vmatpush1.msra.mxu0 0.0
        %1234 = vmatprep.subr.mxu0 0.0
        %1235 = vmatpush1.msra.mxu0 0.0
        %1236 = vmatprep.subr.mxu0 0.0
        %1237 = vmatpush1.msra.mxu0 0.0
        %1238 = vmatprep.subr.mxu0 0.0
        %1239 = vmatpush1.msra.mxu0 0.0
        %1240 = vmatprep.subr.mxu0 0.0
        %1241 = vmatpush1.msra.mxu0 0.0
        %1242 = vmatprep.subr.mxu0 0.0
        %1243 = vmatpush1.msra.mxu0 0.0
        %1244 = vmatprep.subr.mxu0 0.0
        %1245 = vmatpush1.msra.mxu0 0.0
        %1246 = vmatprep.subr.mxu0 0.0
        %1247 = vmatpush1.msra.mxu0 0.0
        %1248 = vmatprep.subr.mxu0 0.0
        %1249 = vmatpush1.msra.mxu0 0.0
        %1250 = vmatprep.subr.mxu0 0.0
        %1251 = vmatpush1.msra.mxu0 0.0
        %1252 = vmatprep.subr.mxu0 0.0
        %1253 = vmatpush1.msra.mxu0 0.0
        %1254 = vmatprep.subr.mxu0 0.0
        %1255 = vmatpush1.msra.mxu0 0.0
        %1256 = vmatprep.subr.mxu0 0.0
        %1257 = vmatpush1.msra.mxu0 0.0
        %1258 = vmatprep.subr.mxu0 0.0
        %1259 = vmatpush1.msra.mxu0 0.0
        %1260 = vmatprep.subr.mxu0 0.0
        %1261 = vmatpush1.msra.mxu0 0.0
        %1262 = vmatprep.subr.mxu0 0.0
        %1263 = vmatpush1.msra.mxu0 0.0
        %1264 = vmatprep.subr.mxu0 0.0
        %1265 = vmatpush1.msra.mxu0 0.0
        %1266 = vmatprep.subr.mxu0 0.0
        %1267 = vmatpush1.msra.mxu0 0.0
        %1268 = vmatprep.subr.mxu0 0.0
        %1269 = vmatpush1.msra.mxu0 0.0
        %1270 = vmatprep.subr.mxu0 0.0
        %1271 = vmatpush1.msra.mxu0 0.0
        %1272 = vmatprep.subr.mxu0 0.0
        %1273 = vmatpush1.msra.mxu0 0.0
        %1274 = vmatprep.mubr.f32.mxu0 0.0
        %1275 = vmatmul.mubr.f32.gmra.mrb[0].mxu0 %v1208
        %v1276 = vpop.f32.mrb[0].mxu0
        %v1277 = vadd.f32 0.0, %v1276
        %v1278 = vpop.f32.mrb[0].mxu0
        %1279 = vdwg.mxu0
        %v1281 = vrot.slane %v1277, 4
        %v1283 = vadd.f32 %v547, %v1281
        %v1284 = vtanh.pop %v1283
        %v1285 = vmul.f32 %v1284, 0.5
        %v1286 = vmul.f32 %v1284, 0.70710677
        %v1287 = verf.f32.pop %v1286
        %v1288 = vadd.f32 %v1287, 1.0
        %v1289 = vmul.f32 %v1285, %v1288
        %v1291 = vrot.slane %v1289, 4
        %v1292 = vsel %vm391, %v1291, 0
        %1294 = vmatprep.subr.mxu0 0.0
        %1295 = vmatpush1.msra.mxu0 %v554
        %1296 = vmatprep.subr.mxu0 0.0
        %1297 = vmatpush1.msra.mxu0 %v555
        %1298 = vmatprep.subr.mxu0 0.0
        %1299 = vmatpush1.msra.mxu0 %v556
        %1300 = vmatprep.subr.mxu0 0.0
        %1301 = vmatpush1.msra.mxu0 %v557
        %1302 = vmatprep.subr.mxu0 0.0
        %1303 = vmatpush1.msra.mxu0 0.0
        %1304 = vmatprep.subr.mxu0 0.0
        %1305 = vmatpush1.msra.mxu0 0.0
        %1306 = vmatprep.subr.mxu0 0.0
        %1307 = vmatpush1.msra.mxu0 0.0
        %1308 = vmatprep.subr.mxu0 0.0
        %1309 = vmatpush1.msra.mxu0 0.0
        %1310 = vmatprep.subr.mxu0 0.0
        %1311 = vmatpush1.msra.mxu0 0.0
        %1312 = vmatprep.subr.mxu0 0.0
        %1313 = vmatpush1.msra.mxu0 0.0
        %1314 = vmatprep.subr.mxu0 0.0
        %1315 = vmatpush1.msra.mxu0 0.0
        %1316 = vmatprep.subr.mxu0 0.0
        %1317 = vmatpush1.msra.mxu0 0.0
        %1318 = vmatprep.subr.mxu0 0.0
        %1319 = vmatpush1.msra.mxu0 0.0
        %1320 = vmatprep.subr.mxu0 0.0
        %1321 = vmatpush1.msra.mxu0 0.0
        %1322 = vmatprep.subr.mxu0 0.0
        %1323 = vmatpush1.msra.mxu0 0.0
        %1324 = vmatprep.subr.mxu0 0.0
        %1325 = vmatpush1.msra.mxu0 0.0
        %1326 = vmatprep.subr.mxu0 0.0
        %1327 = vmatpush1.msra.mxu0 0.0
        %1328 = vmatprep.subr.mxu0 0.0
        %1329 = vmatpush1.msra.mxu0 0.0
        %1330 = vmatprep.subr.mxu0 0.0
        %1331 = vmatpush1.msra.mxu0 0.0
        %1332 = vmatprep.subr.mxu0 0.0
        %1333 = vmatpush1.msra.mxu0 0.0
        %1334 = vmatprep.subr.mxu0 0.0
        %1335 = vmatpush1.msra.mxu0 0.0
        %1336 = vmatprep.subr.mxu0 0.0
        %1337 = vmatpush1.msra.mxu0 0.0
        %1338 = vmatprep.subr.mxu0 0.0
        %1339 = vmatpush1.msra.mxu0 0.0
        %1340 = vmatprep.subr.mxu0 0.0
        %1341 = vmatpush1.msra.mxu0 0.0
        %1342 = vmatprep.subr.mxu0 0.0
        %1343 = vmatpush1.msra.mxu0 0.0
        %1344 = vmatprep.subr.mxu0 0.0
        %1345 = vmatpush1.msra.mxu0 0.0
        %1346 = vmatprep.subr.mxu0 0.0
        %1347 = vmatpush1.msra.mxu0 0.0
        %1348 = vmatprep.subr.mxu0 0.0
        %1349 = vmatpush1.msra.mxu0 0.0
        %1350 = vmatprep.subr.mxu0 0.0
        %1351 = vmatpush1.msra.mxu0 0.0
        %1352 = vmatprep.subr.mxu0 0.0
        %1353 = vmatpush1.msra.mxu0 0.0
        %1354 = vmatprep.subr.mxu0 0.0
        %1355 = vmatpush1.msra.mxu0 0.0
        %1356 = vmatprep.subr.mxu0 0.0
        %1357 = vmatpush1.msra.mxu0 0.0
        %1358 = vmatprep.mubr.f32.mxu0 0.0
        %1359 = vmatmul.mubr.f32.gmra.mrb[0].mxu0 %v1292
        %v1360 = vpop.f32.mrb[0].mxu0
        %v1361 = vadd.f32 %v558, %v1360
        %v1362 = vpop.f32.mrb[0].mxu0
        %1363 = vdwg.mxu0
        %v1365 = vrot.slane %v1361, 4
        %v1367 = vadd.f32 %v379, %v1365
        %vm1368 = vcmask 258052
        %1369 = vst.msk [vmem:[%s378] sm:$0x10] %vm1368, %v1367
        %v1371 = vrot.slane %v1284, 4
        %v1372 = vsel %vm391, %v1371, 0
        %1374 = vmatprep.subr.mxu0 0.0
        %1375 = vmatpush1.msra.mxu0 %v550
        %1376 = vmatprep.subr.mxu0 0.0
        %1377 = vmatpush1.msra.mxu0 %v551
        %1378 = vmatprep.subr.mxu0 0.0
        %1379 = vmatpush1.msra.mxu0 %v552
        %1380 = vmatprep.subr.mxu0 0.0
        %1381 = vmatpush1.msra.mxu0 %v553
        %1382 = vmatprep.subr.mxu0 0.0
        %1383 = vmatpush1.msra.mxu0 0.0
        %1384 = vmatprep.subr.mxu0 0.0
        %1385 = vmatpush1.msra.mxu0 0.0
        %1386 = vmatprep.subr.mxu0 0.0
        %1387 = vmatpush1.msra.mxu0 0.0
        %1388 = vmatprep.subr.mxu0 0.0
        %1389 = vmatpush1.msra.mxu0 0.0
        %1390 = vmatprep.subr.mxu0 0.0
        %1391 = vmatpush1.msra.mxu0 0.0
        %1392 = vmatprep.subr.mxu0 0.0
        %1393 = vmatpush1.msra.mxu0 0.0
        %1394 = vmatprep.subr.mxu0 0.0
        %1395 = vmatpush1.msra.mxu0 0.0
        %1396 = vmatprep.subr.mxu0 0.0
        %1397 = vmatpush1.msra.mxu0 0.0
        %1398 = vmatprep.subr.mxu0 0.0
        %1399 = vmatpush1.msra.mxu0 0.0
        %1400 = vmatprep.subr.mxu0 0.0
        %1401 = vmatpush1.msra.mxu0 0.0
        %1402 = vmatprep.subr.mxu0 0.0
        %1403 = vmatpush1.msra.mxu0 0.0
        %1404 = vmatprep.subr.mxu0 0.0
        %1405 = vmatpush1.msra.mxu0 0.0
        %1406 = vmatprep.subr.mxu0 0.0
        %1407 = vmatpush1.msra.mxu0 0.0
        %1408 = vmatprep.subr.mxu0 0.0
        %1409 = vmatpush1.msra.mxu0 0.0
        %1410 = vmatprep.subr.mxu0 0.0
        %1411 = vmatpush1.msra.mxu0 0.0
        %1412 = vmatprep.subr.mxu0 0.0
        %1413 = vmatpush1.msra.mxu0 0.0
        %1414 = vmatprep.subr.mxu0 0.0
        %1415 = vmatpush1.msra.mxu0 0.0
        %1416 = vmatprep.subr.mxu0 0.0
        %1417 = vmatpush1.msra.mxu0 0.0
        %1418 = vmatprep.subr.mxu0 0.0
        %1419 = vmatpush1.msra.mxu0 0.0
        %1420 = vmatprep.subr.mxu0 0.0
        %1421 = vmatpush1.msra.mxu0 0.0
        %1422 = vmatprep.subr.mxu0 0.0
        %1423 = vmatpush1.msra.mxu0 0.0
        %1424 = vmatprep.subr.mxu0 0.0
        %1425 = vmatpush1.msra.mxu0 0.0
        %1426 = vmatprep.subr.mxu0 0.0
        %1427 = vmatpush1.msra.mxu0 0.0
        %1428 = vmatprep.subr.mxu0 0.0
        %1429 = vmatpush1.msra.mxu0 0.0
        %1430 = vmatprep.subr.mxu0 0.0
        %1431 = vmatpush1.msra.mxu0 0.0
        %1432 = vmatprep.subr.mxu0 0.0
        %1433 = vmatpush1.msra.mxu0 0.0
        %1434 = vmatprep.subr.mxu0 0.0
        %1435 = vmatpush1.msra.mxu0 0.0
        %1436 = vmatprep.subr.mxu0 0.0
        %1437 = vmatpush1.msra.mxu0 0.0
        %1438 = vmatprep.mubr.f32.mxu0 0.0
        %1439 = vmatmul.mubr.f32.gmra.mrb[0].mxu0 %v1372
        %v1440 = vpop.f32.mrb[0].mxu0
        %v1441 = vadd.f32 0.0, %v1440
        %v1442 = vpop.f32.mrb[0].mxu0
        %1443 = vdwg.mxu0
        %v1445 = vrot.slane %v1441, 3
        %v1447 = vadd.f32 %v547, %v1445
        %v1448 = vtanh.pop %v1447
        %v1449 = vmul.f32 %v1448, 0.5
        %v1450 = vmul.f32 %v1448, 0.70710677
        %v1451 = verf.f32.pop %v1450
        %v1452 = vadd.f32 %v1451, 1.0
        %v1453 = vmul.f32 %v1449, %v1452
        %v1455 = vrot.slane %v1453, 5
        %v1456 = vsel %vm391, %v1455, 0
        %1458 = vmatprep.subr.mxu0 0.0
        %1459 = vmatpush1.msra.mxu0 %v554
        %1460 = vmatprep.subr.mxu0 0.0
        %1461 = vmatpush1.msra.mxu0 %v555
        %1462 = vmatprep.subr.mxu0 0.0
        %1463 = vmatpush1.msra.mxu0 %v556
        %1464 = vmatprep.subr.mxu0 0.0
        %1465 = vmatpush1.msra.mxu0 %v557
        %1466 = vmatprep.subr.mxu0 0.0
        %1467 = vmatpush1.msra.mxu0 0.0
        %1468 = vmatprep.subr.mxu0 0.0
        %1469 = vmatpush1.msra.mxu0 0.0
        %1470 = vmatprep.subr.mxu0 0.0
        %1471 = vmatpush1.msra.mxu0 0.0
        %1472 = vmatprep.subr.mxu0 0.0
        %1473 = vmatpush1.msra.mxu0 0.0
        %1474 = vmatprep.subr.mxu0 0.0
        %1475 = vmatpush1.msra.mxu0 0.0
        %1476 = vmatprep.subr.mxu0 0.0
        %1477 = vmatpush1.msra.mxu0 0.0
        %1478 = vmatprep.subr.mxu0 0.0
        %1479 = vmatpush1.msra.mxu0 0.0
        %1480 = vmatprep.subr.mxu0 0.0
        %1481 = vmatpush1.msra.mxu0 0.0
        %1482 = vmatprep.subr.mxu0 0.0
        %1483 = vmatpush1.msra.mxu0 0.0
        %1484 = vmatprep.subr.mxu0 0.0
        %1485 = vmatpush1.msra.mxu0 0.0
        %1486 = vmatprep.subr.mxu0 0.0
        %1487 = vmatpush1.msra.mxu0 0.0
        %1488 = vmatprep.subr.mxu0 0.0
        %1489 = vmatpush1.msra.mxu0 0.0
        %1490 = vmatprep.subr.mxu0 0.0
        %1491 = vmatpush1.msra.mxu0 0.0
        %1492 = vmatprep.subr.mxu0 0.0
        %1493 = vmatpush1.msra.mxu0 0.0
        %1494 = vmatprep.subr.mxu0 0.0
        %1495 = vmatpush1.msra.mxu0 0.0
        %1496 = vmatprep.subr.mxu0 0.0
        %1497 = vmatpush1.msra.mxu0 0.0
        %1498 = vmatprep.subr.mxu0 0.0
        %1499 = vmatpush1.msra.mxu0 0.0
        %1500 = vmatprep.subr.mxu0 0.0
        %1501 = vmatpush1.msra.mxu0 0.0
        %1502 = vmatprep.subr.mxu0 0.0
        %1503 = vmatpush1.msra.mxu0 0.0
        %1504 = vmatprep.subr.mxu0 0.0
        %1505 = vmatpush1.msra.mxu0 0.0
        %1506 = vmatprep.subr.mxu0 0.0
        %1507 = vmatpush1.msra.mxu0 0.0
        %1508 = vmatprep.subr.mxu0 0.0
        %1509 = vmatpush1.msra.mxu0 0.0
        %1510 = vmatprep.subr.mxu0 0.0
        %1511 = vmatpush1.msra.mxu0 0.0
        %1512 = vmatprep.subr.mxu0 0.0
        %1513 = vmatpush1.msra.mxu0 0.0
        %1514 = vmatprep.subr.mxu0 0.0
        %1515 = vmatpush1.msra.mxu0 0.0
        %1516 = vmatprep.subr.mxu0 0.0
        %1517 = vmatpush1.msra.mxu0 0.0
        %1518 = vmatprep.subr.mxu0 0.0
        %1519 = vmatpush1.msra.mxu0 0.0
        %1520 = vmatprep.subr.mxu0 0.0
        %1521 = vmatpush1.msra.mxu0 0.0
        %1522 = vmatprep.mubr.f32.mxu0 0.0
        %1523 = vmatmul.mubr.f32.gmra.mrb[0].mxu0 %v1456
        %v1524 = vpop.f32.mrb[0].mxu0
        %v1525 = vadd.f32 %v558, %v1524
        %v1526 = vpop.f32.mrb[0].mxu0
        %1527 = vdwg.mxu0
        %v1529 = vrot.slane %v1525, 3
        %v1531 = vadd.f32 %v379, %v1529
        %vm1532 = vcmask 259077
        %1533 = vst.msk [vmem:[%s378] sm:$0x20] %vm1532, %v1531
        %v1535 = vrot.slane %v1448, 5
        %v1536 = vsel %vm391, %v1535, 0
        %1538 = vmatprep.subr.mxu0 0.0
        %1539 = vmatpush1.msra.mxu0 %v550
        %1540 = vmatprep.subr.mxu0 0.0
        %1541 = vmatpush1.msra.mxu0 %v551
        %1542 = vmatprep.subr.mxu0 0.0
        %1543 = vmatpush1.msra.mxu0 %v552
        %1544 = vmatprep.subr.mxu0 0.0
        %1545 = vmatpush1.msra.mxu0 %v553
        %1546 = vmatprep.subr.mxu0 0.0
        %1547 = vmatpush1.msra.mxu0 0.0
        %1548 = vmatprep.subr.mxu0 0.0
        %1549 = vmatpush1.msra.mxu0 0.0
        %1550 = vmatprep.subr.mxu0 0.0
        %1551 = vmatpush1.msra.mxu0 0.0
        %1552 = vmatprep.subr.mxu0 0.0
        %1553 = vmatpush1.msra.mxu0 0.0
        %1554 = vmatprep.subr.mxu0 0.0
        %1555 = vmatpush1.msra.mxu0 0.0
        %1556 = vmatprep.subr.mxu0 0.0
        %1557 = vmatpush1.msra.mxu0 0.0
        %1558 = vmatprep.subr.mxu0 0.0
        %1559 = vmatpush1.msra.mxu0 0.0
        %1560 = vmatprep.subr.mxu0 0.0
        %1561 = vmatpush1.msra.mxu0 0.0
        %1562 = vmatprep.subr.mxu0 0.0
        %1563 = vmatpush1.msra.mxu0 0.0
        %1564 = vmatprep.subr.mxu0 0.0
        %1565 = vmatpush1.msra.mxu0 0.0
        %1566 = vmatprep.subr.mxu0 0.0
        %1567 = vmatpush1.msra.mxu0 0.0
        %1568 = vmatprep.subr.mxu0 0.0
        %1569 = vmatpush1.msra.mxu0 0.0
        %1570 = vmatprep.subr.mxu0 0.0
        %1571 = vmatpush1.msra.mxu0 0.0
        %1572 = vmatprep.subr.mxu0 0.0
        %1573 = vmatpush1.msra.mxu0 0.0
        %1574 = vmatprep.subr.mxu0 0.0
        %1575 = vmatpush1.msra.mxu0 0.0
        %1576 = vmatprep.subr.mxu0 0.0
        %1577 = vmatpush1.msra.mxu0 0.0
        %1578 = vmatprep.subr.mxu0 0.0
        %1579 = vmatpush1.msra.mxu0 0.0
        %1580 = vmatprep.subr.mxu0 0.0
        %1581 = vmatpush1.msra.mxu0 0.0
        %1582 = vmatprep.subr.mxu0 0.0
        %1583 = vmatpush1.msra.mxu0 0.0
        %1584 = vmatprep.subr.mxu0 0.0
        %1585 = vmatpush1.msra.mxu0 0.0
        %1586 = vmatprep.subr.mxu0 0.0
        %1587 = vmatpush1.msra.mxu0 0.0
        %1588 = vmatprep.subr.mxu0 0.0
        %1589 = vmatpush1.msra.mxu0 0.0
        %1590 = vmatprep.subr.mxu0 0.0
        %1591 = vmatpush1.msra.mxu0 0.0
        %1592 = vmatprep.subr.mxu0 0.0
        %1593 = vmatpush1.msra.mxu0 0.0
        %1594 = vmatprep.subr.mxu0 0.0
        %1595 = vmatpush1.msra.mxu0 0.0
        %1596 = vmatprep.subr.mxu0 0.0
        %1597 = vmatpush1.msra.mxu0 0.0
        %1598 = vmatprep.subr.mxu0 0.0
        %1599 = vmatpush1.msra.mxu0 0.0
        %1600 = vmatprep.subr.mxu0 0.0
        %1601 = vmatpush1.msra.mxu0 0.0
        %1602 = vmatprep.mubr.f32.mxu0 0.0
        %1603 = vmatmul.mubr.f32.gmra.mrb[0].mxu0 %v1536
        %v1604 = vpop.f32.mrb[0].mxu0
        %v1605 = vadd.f32 0.0, %v1604
        %v1606 = vpop.f32.mrb[0].mxu0
        %1607 = vdwg.mxu0
        %v1609 = vrot.slane %v1605, 2
        %v1611 = vadd.f32 %v547, %v1609
        %v1612 = vtanh.pop %v1611
        %v1613 = vmul.f32 %v1612, 0.5
        %v1614 = vmul.f32 %v1612, 0.70710677
        %v1615 = verf.f32.pop %v1614
        %v1616 = vadd.f32 %v1615, 1.0
        %v1617 = vmul.f32 %v1613, %v1616
        %v1619 = vrot.slane %v1617, 6
        %v1620 = vsel %vm391, %v1619, 0
        %1622 = vmatprep.subr.mxu0 0.0
        %1623 = vmatpush1.msra.mxu0 %v554
        %1624 = vmatprep.subr.mxu0 0.0
        %1625 = vmatpush1.msra.mxu0 %v555
        %1626 = vmatprep.subr.mxu0 0.0
        %1627 = vmatpush1.msra.mxu0 %v556
        %1628 = vmatprep.subr.mxu0 0.0
        %1629 = vmatpush1.msra.mxu0 %v557
        %1630 = vmatprep.subr.mxu0 0.0
        %1631 = vmatpush1.msra.mxu0 0.0
        %1632 = vmatprep.subr.mxu0 0.0
        %1633 = vmatpush1.msra.mxu0 0.0
        %1634 = vmatprep.subr.mxu0 0.0
        %1635 = vmatpush1.msra.mxu0 0.0
        %1636 = vmatprep.subr.mxu0 0.0
        %1637 = vmatpush1.msra.mxu0 0.0
        %1638 = vmatprep.subr.mxu0 0.0
        %1639 = vmatpush1.msra.mxu0 0.0
        %1640 = vmatprep.subr.mxu0 0.0
        %1641 = vmatpush1.msra.mxu0 0.0
        %1642 = vmatprep.subr.mxu0 0.0
        %1643 = vmatpush1.msra.mxu0 0.0
        %1644 = vmatprep.subr.mxu0 0.0
        %1645 = vmatpush1.msra.mxu0 0.0
        %1646 = vmatprep.subr.mxu0 0.0
        %1647 = vmatpush1.msra.mxu0 0.0
        %1648 = vmatprep.subr.mxu0 0.0
        %1649 = vmatpush1.msra.mxu0 0.0
        %1650 = vmatprep.subr.mxu0 0.0
        %1651 = vmatpush1.msra.mxu0 0.0
        %1652 = vmatprep.subr.mxu0 0.0
        %1653 = vmatpush1.msra.mxu0 0.0
        %1654 = vmatprep.subr.mxu0 0.0
        %1655 = vmatpush1.msra.mxu0 0.0
        %1656 = vmatprep.subr.mxu0 0.0
        %1657 = vmatpush1.msra.mxu0 0.0
        %1658 = vmatprep.subr.mxu0 0.0
        %1659 = vmatpush1.msra.mxu0 0.0
        %1660 = vmatprep.subr.mxu0 0.0
        %1661 = vmatpush1.msra.mxu0 0.0
        %1662 = vmatprep.subr.mxu0 0.0
        %1663 = vmatpush1.msra.mxu0 0.0
        %1664 = vmatprep.subr.mxu0 0.0
        %1665 = vmatpush1.msra.mxu0 0.0
        %1666 = vmatprep.subr.mxu0 0.0
        %1667 = vmatpush1.msra.mxu0 0.0
        %1668 = vmatprep.subr.mxu0 0.0
        %1669 = vmatpush1.msra.mxu0 0.0
        %1670 = vmatprep.subr.mxu0 0.0
        %1671 = vmatpush1.msra.mxu0 0.0
        %1672 = vmatprep.subr.mxu0 0.0
        %1673 = vmatpush1.msra.mxu0 0.0
        %1674 = vmatprep.subr.mxu0 0.0
        %1675 = vmatpush1.msra.mxu0 0.0
        %1676 = vmatprep.subr.mxu0 0.0
        %1677 = vmatpush1.msra.mxu0 0.0
        %1678 = vmatprep.subr.mxu0 0.0
        %1679 = vmatpush1.msra.mxu0 0.0
        %1680 = vmatprep.subr.mxu0 0.0
        %1681 = vmatpush1.msra.mxu0 0.0
        %1682 = vmatprep.subr.mxu0 0.0
        %1683 = vmatpush1.msra.mxu0 0.0
        %1684 = vmatprep.subr.mxu0 0.0
        %1685 = vmatpush1.msra.mxu0 0.0
        %1686 = vmatprep.mubr.f32.mxu0 0.0
        %1687 = vmatmul.mubr.f32.gmra.mrb[0].mxu0 %v1620
        %v1688 = vpop.f32.mrb[0].mxu0
        %v1689 = vadd.f32 %v558, %v1688
        %v1690 = vpop.f32.mrb[0].mxu0
        %1691 = vdwg.mxu0
        %v1693 = vrot.slane %v1689, 2
        %v1695 = vadd.f32 %v379, %v1693
        %vm1696 = vcmask 260102
        %1697 = vst.msk [vmem:[%s378] sm:$0x40] %vm1696, %v1695
        %v1699 = vrot.slane %v1612, 6
        %v1700 = vsel %vm391, %v1699, 0
        %1702 = vmatprep.subr.mxu0 0.0
        %1703 = vmatpush1.msra.mxu0 %v550
        %1704 = vmatprep.subr.mxu0 0.0
        %1705 = vmatpush1.msra.mxu0 %v551
        %1706 = vmatprep.subr.mxu0 0.0
        %1707 = vmatpush1.msra.mxu0 %v552
        %1708 = vmatprep.subr.mxu0 0.0
        %1709 = vmatpush1.msra.mxu0 %v553
        %1710 = vmatprep.subr.mxu0 0.0
        %1711 = vmatpush1.msra.mxu0 0.0
        %1712 = vmatprep.subr.mxu0 0.0
        %1713 = vmatpush1.msra.mxu0 0.0
        %1714 = vmatprep.subr.mxu0 0.0
        %1715 = vmatpush1.msra.mxu0 0.0
        %1716 = vmatprep.subr.mxu0 0.0
        %1717 = vmatpush1.msra.mxu0 0.0
        %1718 = vmatprep.subr.mxu0 0.0
        %1719 = vmatpush1.msra.mxu0 0.0
        %1720 = vmatprep.subr.mxu0 0.0
        %1721 = vmatpush1.msra.mxu0 0.0
        %1722 = vmatprep.subr.mxu0 0.0
        %1723 = vmatpush1.msra.mxu0 0.0
        %1724 = vmatprep.subr.mxu0 0.0
        %1725 = vmatpush1.msra.mxu0 0.0
        %1726 = vmatprep.subr.mxu0 0.0
        %1727 = vmatpush1.msra.mxu0 0.0
        %1728 = vmatprep.subr.mxu0 0.0
        %1729 = vmatpush1.msra.mxu0 0.0
        %1730 = vmatprep.subr.mxu0 0.0
        %1731 = vmatpush1.msra.mxu0 0.0
        %1732 = vmatprep.subr.mxu0 0.0
        %1733 = vmatpush1.msra.mxu0 0.0
        %1734 = vmatprep.subr.mxu0 0.0
        %1735 = vmatpush1.msra.mxu0 0.0
        %1736 = vmatprep.subr.mxu0 0.0
        %1737 = vmatpush1.msra.mxu0 0.0
        %1738 = vmatprep.subr.mxu0 0.0
        %1739 = vmatpush1.msra.mxu0 0.0
        %1740 = vmatprep.subr.mxu0 0.0
        %1741 = vmatpush1.msra.mxu0 0.0
        %1742 = vmatprep.subr.mxu0 0.0
        %1743 = vmatpush1.msra.mxu0 0.0
        %1744 = vmatprep.subr.mxu0 0.0
        %1745 = vmatpush1.msra.mxu0 0.0
        %1746 = vmatprep.subr.mxu0 0.0
        %1747 = vmatpush1.msra.mxu0 0.0
        %1748 = vmatprep.subr.mxu0 0.0
        %1749 = vmatpush1.msra.mxu0 0.0
        %1750 = vmatprep.subr.mxu0 0.0
        %1751 = vmatpush1.msra.mxu0 0.0
        %1752 = vmatprep.subr.mxu0 0.0
        %1753 = vmatpush1.msra.mxu0 0.0
        %1754 = vmatprep.subr.mxu0 0.0
        %1755 = vmatpush1.msra.mxu0 0.0
        %1756 = vmatprep.subr.mxu0 0.0
        %1757 = vmatpush1.msra.mxu0 0.0
        %1758 = vmatprep.subr.mxu0 0.0
        %1759 = vmatpush1.msra.mxu0 0.0
        %1760 = vmatprep.subr.mxu0 0.0
        %1761 = vmatpush1.msra.mxu0 0.0
        %1762 = vmatprep.subr.mxu0 0.0
        %1763 = vmatpush1.msra.mxu0 0.0
        %1764 = vmatprep.subr.mxu0 0.0
        %1765 = vmatpush1.msra.mxu0 0.0
        %1766 = vmatprep.mubr.f32.mxu0 0.0
        %1767 = vmatmul.mubr.f32.gmra.mrb[0].mxu0 %v1700
        %v1768 = vpop.f32.mrb[0].mxu0
        %v1769 = vadd.f32 0.0, %v1768
        %v1770 = vpop.f32.mrb[0].mxu0
        %1771 = vdwg.mxu0
        %v1773 = vrot.slane %v1769, 1
        %v1775 = vadd.f32 %v547, %v1773
        %v1776 = vtanh.pop %v1775
        %v1777 = vmul.f32 %v1776, 0.5
        %v1778 = vmul.f32 %v1776, 0.70710677
        %v1779 = verf.f32.pop %v1778
        %v1780 = vadd.f32 %v1779, 1.0
        %v1781 = vmul.f32 %v1777, %v1780
        %v1783 = vrot.slane %v1781, 7
        %v1784 = vsel %vm391, %v1783, 0
        %1786 = vmatprep.subr.mxu0 0.0
        %1787 = vmatpush1.msra.mxu0 %v554
        %1788 = vmatprep.subr.mxu0 0.0
        %1789 = vmatpush1.msra.mxu0 %v555
        %1790 = vmatprep.subr.mxu0 0.0
        %1791 = vmatpush1.msra.mxu0 %v556
        %1792 = vmatprep.subr.mxu0 0.0
        %1793 = vmatpush1.msra.mxu0 %v557
        %1794 = vmatprep.subr.mxu0 0.0
        %1795 = vmatpush1.msra.mxu0 0.0
        %1796 = vmatprep.subr.mxu0 0.0
        %1797 = vmatpush1.msra.mxu0 0.0
        %1798 = vmatprep.subr.mxu0 0.0
        %1799 = vmatpush1.msra.mxu0 0.0
        %1800 = vmatprep.subr.mxu0 0.0
        %1801 = vmatpush1.msra.mxu0 0.0
        %1802 = vmatprep.subr.mxu0 0.0
        %1803 = vmatpush1.msra.mxu0 0.0
        %1804 = vmatprep.subr.mxu0 0.0
        %1805 = vmatpush1.msra.mxu0 0.0
        %1806 = vmatprep.subr.mxu0 0.0
        %1807 = vmatpush1.msra.mxu0 0.0
        %1808 = vmatprep.subr.mxu0 0.0
        %1809 = vmatpush1.msra.mxu0 0.0
        %1810 = vmatprep.subr.mxu0 0.0
        %1811 = vmatpush1.msra.mxu0 0.0
        %1812 = vmatprep.subr.mxu0 0.0
        %1813 = vmatpush1.msra.mxu0 0.0
        %1814 = vmatprep.subr.mxu0 0.0
        %1815 = vmatpush1.msra.mxu0 0.0
        %1816 = vmatprep.subr.mxu0 0.0
        %1817 = vmatpush1.msra.mxu0 0.0
        %1818 = vmatprep.subr.mxu0 0.0
        %1819 = vmatpush1.msra.mxu0 0.0
        %1820 = vmatprep.subr.mxu0 0.0
        %1821 = vmatpush1.msra.mxu0 0.0
        %1822 = vmatprep.subr.mxu0 0.0
        %1823 = vmatpush1.msra.mxu0 0.0
        %1824 = vmatprep.subr.mxu0 0.0
        %1825 = vmatpush1.msra.mxu0 0.0
        %1826 = vmatprep.subr.mxu0 0.0
        %1827 = vmatpush1.msra.mxu0 0.0
        %1828 = vmatprep.subr.mxu0 0.0
        %1829 = vmatpush1.msra.mxu0 0.0
        %1830 = vmatprep.subr.mxu0 0.0
        %1831 = vmatpush1.msra.mxu0 0.0
        %1832 = vmatprep.subr.mxu0 0.0
        %1833 = vmatpush1.msra.mxu0 0.0
        %1834 = vmatprep.subr.mxu0 0.0
        %1835 = vmatpush1.msra.mxu0 0.0
        %1836 = vmatprep.subr.mxu0 0.0
        %1837 = vmatpush1.msra.mxu0 0.0
        %1838 = vmatprep.subr.mxu0 0.0
        %1839 = vmatpush1.msra.mxu0 0.0
        %1840 = vmatprep.subr.mxu0 0.0
        %1841 = vmatpush1.msra.mxu0 0.0
        %1842 = vmatprep.subr.mxu0 0.0
        %1843 = vmatpush1.msra.mxu0 0.0
        %1844 = vmatprep.subr.mxu0 0.0
        %1845 = vmatpush1.msra.mxu0 0.0
        %1846 = vmatprep.subr.mxu0 0.0
        %1847 = vmatpush1.msra.mxu0 0.0
        %1848 = vmatprep.subr.mxu0 0.0
        %1849 = vmatpush1.msra.mxu0 0.0
        %1850 = vmatprep.mubr.f32.mxu0 0.0
        %1851 = vmatmul.mubr.f32.gmra.mrb[0].mxu0 %v1784
        %v1852 = vpop.f32.mrb[0].mxu0
        %v1853 = vadd.f32 %v558, %v1852
        %v1854 = vpop.f32.mrb[0].mxu0
        %1855 = vdwg.mxu0
        %v1857 = vrot.slane %v1853, 1
        %v1859 = vadd.f32 %v379, %v1857
        %vm1860 = vcmask 261127
        %1861 = vst.msk [vmem:[%s378] sm:$0x80] %vm1860, %v1859
        %s1862 = sand.u32 %s208, 1
        %s1863 = scalar_lea.sflag [#allocation4], %s1862
        %s1864 = sand.u32 %s208, 1
        %s1865 = smul.addr %s1864, 8
        %s1866 = scalar_lea.vmem [#allocation11], %s1865
        // Predicated region
        $region73: #{tpu_custom_call.1} parent=51 // pred_check
          %p1867 = pneg %p218
        $region74: #{tpu_custom_call.1} parent=51 // pred_check_branch
          %1869 = sbr.rel (%p1867) target = $region76
        $region75: #{tpu_custom_call.1} parent=51 // pred_region
          %s1871 = ssub.s32 128, 128
          %1872 = vsyncadd %s1863, %s1871
          %s1873 = smul.addr %s27, 128
          %s1874 = scalar_lea.hbm %s8, %s1873
          %s1876 = sshll.u32 %s1866, 4
          %s1877 = int_to_ptr.vmem [resolvable:$true] %s1876
          %1879 = dma.vmem_to_hbm [thread:$0]  %s1877, 128, %s1874, %s1863
        $region76: #{tpu_custom_call.1} parent=51 // pred_fallthru
          _
      $region52: #{tpu_custom_call.1} parent=5 // pred_fallthru
        _
      %p1880 = scmp.le.s32.totalorder 2, %s22
      // Predicated region
      $region77: #{tpu_custom_call.1} parent=5 // pred_check
        %p1881 = pneg %p1880
      $region78: #{tpu_custom_call.1} parent=5 // pred_check_branch
        %1883 = sbr.rel (%p1881) target = $region80
      $region79: #{tpu_custom_call.1} parent=5 // pred_region
        %s1884 = ssub.s32 %s22, 2
        // Predicated region
        $region81: #{tpu_custom_call.1} parent=79 // pred_check
          %p1885 = pneg %p224
        $region82: #{tpu_custom_call.1} parent=79 // pred_check_branch
          %1887 = sbr.rel (%p1885) target = $region84
        $region83: #{tpu_custom_call.1} parent=79 // pred_region
          %s1888 = sand.u32 %s209, 1
          %s1889 = scalar_lea.sflag [#allocation4], %s1888
          %s1890 = sand.u32 %s209, 1
          %s1891 = smul.addr %s1890, 8
          %s1892 = scalar_lea.vmem [#allocation11], %s1891
          %1893 = dma.done %s1889, 128
        $region84: #{tpu_custom_call.1} parent=79 // pred_fallthru
          _
      $region80: #{tpu_custom_call.1} parent=5 // pred_fallthru
        _
    $region6: #{tpu_custom_call.1} parent=1 // loop_footer
      %s26 = sadd.s32 1, %s22
    $region7: #{tpu_custom_call.1} parent=1 // loop_footer_branch
      %21 = sbr.rel target = $region3
    $region8: #{tpu_custom_call.1} parent=1 // loop_exit
      _
    %1894 = vsyncpa [#allocation3], 1
    %s1895 = scalar_lea.sflag [#allocation3], 1
    %1896 = vsyncpa %s1895, 1
    %1897 = vsyncpa [#allocation6], 1
    %1898 = vsyncpa [#allocation9], 1
    %1899 = vsyncpa [#allocation4], 1
    %s1900 = scalar_lea.sflag [#allocation4], 1
    %1901 = vsyncpa %s1900, 1

</llo_original>
